<compile_context>
chip_gen: v7x
topology: tpu7x:2x2x1
jax: 0.10.0
libtpu: 0.0.40
codegen_flags: <defaults>
</compile_context>

<pallas_src>
import jax
import jax.numpy as jnp
from jax.experimental import pallas as pl
from jax.experimental.pallas import tpu as pltpu

_TILE_BUDGET_BYTES = 16 * 1024 * 1024   # double-buffered I/O + f32 temporaries
_VMEM_LIMIT_BYTES = 48 * 1024 * 1024    # < physical VMEM on v5e / v6e / v7x
_MAX_TILE_ROWS = 512                    # ~85% of HBM roofline already reached


def _cdiv(a, b):
    return -(-a // b)


def _num_tensorcores():
    # v7x exposes 2 TensorCores to one Pallas kernel (sharded via the leading
    # "parallel" grid axis); v5e / v6e have a single TensorCore.
    try:
        kind = jax.devices()[0].device_kind.lower()
    except Exception:
        return 1
    return 2 if "v7" in kind else 1


def _plan(h, w, pred_itemsize, mask_itemsize, ncores):
    """Pick tile_h (multiple of 32) so double-buffered I/O + f32 temps fit."""
    io_row = w * (3 * pred_itemsize + 4 * mask_itemsize + 2)  # +2: bf16 output
    tmp_row = w * 4 * 8                                       # live f32 temporaries
    t = _TILE_BUDGET_BYTES // (2 * io_row + tmp_row)
    t = max(32, min((t // 32) * 32, _MAX_TILE_ROWS))
    if t >= h:
        return h, 1, 1, 1                     # full-H single block, one core
    total_blocks = _cdiv(h, t)
    nc = ncores if total_blocks >= ncores else 1
    steps = _cdiv(total_blocks, nc)
    return t, total_blocks, steps, nc


def _make_kernel(h, tile_h, steps, total_blocks, needs_mask, dup_possible):
    def kernel(pred_ref, gt_text_ref, gt_mask_ref, gt_head_ref, gt_center_ref,
               neg_ref, stats_ref, acc_ref):
        f32 = jnp.float32
        g = pl.program_id(0)
        b = pl.program_id(1)
        i = pl.program_id(2)

        @pl.when(jnp.logical_and(b == 0, i == 0))
        def _init():
            acc_ref[...] = jnp.zeros_like(acc_ref)

        x_t = pred_ref[0].astype(f32)           # text logits   (tile_h, W)
        x_h = pred_ref[1].astype(f32)           # head logits
        x_c = pred_ref[2].astype(f32)           # center logits
        g_t = gt_text_ref[...].astype(f32)
        g_m = gt_mask_ref[...].astype(f32)
        g_h = gt_head_ref[...].astype(f32)
        g_c = gt_center_ref[...].astype(f32)

        ub = g * steps + i                      # unclamped H block index
        if needs_mask:
            # Boundary block re-reads rows past H (garbage) and fully-clamped
            # duplicate steps would double count: zero the logits and the two
            # weight masks on invalid rows with jnp.where (garbage * 0 can be
            # NaN, so masking the weights alone would not be enough).
            cb = jnp.minimum(ub, total_blocks - 1)
            rows = jax.lax.broadcasted_iota(jnp.int32, (tile_h, 1), 0)
            valid = jnp.logical_and(ub < total_blocks, cb * tile_h + rows < h)
            x_t = jnp.where(valid, x_t, 0.0)
            x_h = jnp.where(valid, x_h, 0.0)
            x_c = jnp.where(valid, x_c, 0.0)
            g_m = jnp.where(valid, g_m, 0.0)
            g_c = jnp.where(valid, g_c, 0.0)

        def bce_with_logits(x, t):
            # == F.binary_cross_entropy(sigmoid(x), t); torch clamps each log
            # term at -100, which for binary targets caps the loss at 100.
            raw = jnp.maximum(x, 0.0) - x * t + jnp.log(1.0 + jnp.exp(-jnp.abs(x)))
            return jnp.minimum(raw, 100.0)

        positive = g_t * g_m                    # == text_mask in the reference
        neg_w = g_m - positive                  # == (1 - gt_text) * gt_mask

        bce_text = bce_with_logits(x_t, g_t)
        neg_map = (bce_text * neg_w).astype(neg_ref.dtype)
        if dup_possible:
            @pl.when(ub < total_blocks)         # duplicate steps must not store
            def _store():
                neg_ref[...] = neg_map
        else:
            neg_ref[...] = neg_map

        bce_center = bce_with_logits(x_c, g_c)
        p_h = jax.nn.sigmoid(x_h)               # smooth-L1 on the probability
        d = p_h - g_h
        ad = jnp.abs(d)
        sl1 = jnp.where(ad < 1.0, 0.5 * d * d, ad - 0.5)

        def rsum(t):                            # lane reduce (XLU) + column sum
            return jnp.sum(jnp.sum(t, axis=-1, keepdims=True))

        pos_loss = rsum(bce_text * positive)
        pos_cnt = rsum(positive)
        mask_cnt = rsum(g_m)                    # neg_cnt = mask_cnt - pos_cnt
        center_num = rsum(bce_center * positive)
        head_num = rsum(sl1 * g_c)
        center_sum = rsum(g_c)

        row = jax.lax.broadcasted_iota(jnp.int32, acc_ref.shape, 0)
        acc_ref[...] += (jnp.where(row == 0, pos_loss, 0.0)
                         + jnp.where(row == 1, pos_cnt, 0.0)
                         + jnp.where(row == 2, mask_cnt, 0.0)
                         + jnp.where(row == 3, center_num, 0.0)
                         + jnp.where(row == 4, head_num, 0.0)
                         + jnp.where(row == 5, center_sum, 0.0))

        @pl.when(jnp.logical_and(b == pl.num_programs(1) - 1,
                                 i == pl.num_programs(2) - 1))
        def _finalize():                        # one stats write per core
            stats_ref[...] = acc_ref[...]

    return kernel


def _lsg_loss_pallas(pred, gt_text, gt_mask, gt_head, gt_center):
    """pred: [N, C>=3, H, W] logits (f32 or bf16); masks: [N, H, W] (any dtype)."""
    n, c, h, w = pred.shape
    assert c >= 3
    pred_b = jnp.dtype(pred.dtype).itemsize
    mask_b = max(jnp.dtype(m.dtype).itemsize
                 for m in (gt_text, gt_mask, gt_head, gt_center))

    tile_h, total_blocks, steps, ncores = _plan(h, w, pred_b, mask_b,
                                                _num_tensorcores())
    hp = total_blocks * tile_h                  # H extent of the output map
    needs_mask = (h % tile_h != 0) or (steps * ncores != total_blocks)
    dup_possible = steps * ncores != total_blocks

    def row_block(g, i):
        return jnp.minimum(g * steps + i, total_blocks - 1)

    pred_spec = pl.BlockSpec((None, 3, tile_h, w),
                             lambda g, b, i: (b, 0, row_block(g, i), 0))
    mask_spec = pl.BlockSpec((None, tile_h, w),
                             lambda g, b, i: (b, row_block(g, i), 0))
    neg_spec = pl.BlockSpec((None, tile_h, w),
                            lambda g, b, i: (b, row_block(g, i), 0))
    stats_spec = pl.BlockSpec((8, 128), lambda g, b, i: (g, 0))

    out_shape = (jax.ShapeDtypeStruct((n, hp, w), jnp.bfloat16),
                 jax.ShapeDtypeStruct((ncores * 8, 128), jnp.float32))

    elems = n * h * w
    cost = pl.CostEstimate(
        flops=40 * elems,
        transcendentals=5 * elems,
        bytes_accessed=elems * (3 * pred_b + 4 * mask_b + 2) + ncores * 8 * 128 * 4)

    kernel = _make_kernel(h, tile_h, steps, total_blocks, needs_mask, dup_possible)
    neg_loss_map, stats = pl.pallas_call(
        kernel,
        grid=(ncores, n, steps),
        in_specs=[pred_spec, mask_spec, mask_spec, mask_spec, mask_spec],
        out_specs=(neg_spec, stats_spec),
        out_shape=out_shape,
        scratch_shapes=[pltpu.VMEM((8, 128), jnp.float32)],
        compiler_params=pltpu.CompilerParams(
            dimension_semantics=("parallel", "arbitrary", "arbitrary"),
            vmem_limit_bytes=_VMEM_LIMIT_BYTES),
        cost_estimate=cost,
    )(pred, gt_text, gt_mask, gt_head, gt_center)

    stats = stats.reshape(ncores, 8, 128)[:, :, 0].sum(axis=0)   # (8,)
    return neg_loss_map, stats


def _ohem_topk_sum(neg_loss_map, k):
    """Exact sum of the k largest entries of the non-negative bf16 loss map.

    Replaces torch.topk / a full-map sort: 15-step binary search for the k-th
    largest value over the bf16 bit pattern (order preserving for values in
    [0, 100]), then one masked-sum pass plus an exact tie correction.
    """
    bits = jax.lax.bitcast_convert_type(neg_loss_map, jnp.uint16).reshape(-1)
    k_i = k.astype(jnp.int32)

    def body(_, lo_hi):
        lo, hi = lo_hi
        mid = (lo + hi) // 2
        cnt = jnp.sum((bits >= mid.astype(jnp.uint16)).astype(jnp.int32))
        take = cnt >= k_i
        return jnp.where(take, mid, lo), jnp.where(take, hi, mid)

    # loss <= 100  =>  bf16 bits <= 0x42C8 < 0x8000, so 15 halvings suffice.
    lo, _ = jax.lax.fori_loop(0, 15, body, (jnp.int32(0), jnp.int32(32768)))
    tau = lo.astype(jnp.uint16)                 # bit pattern of k-th largest
    gt = bits > tau
    count_gt = jnp.sum(gt.astype(jnp.int32))
    sum_gt = jnp.sum(jnp.where(gt, neg_loss_map.reshape(-1).astype(jnp.float32),
                               0.0))
    tau_val = jax.lax.bitcast_convert_type(tau, jnp.bfloat16).astype(jnp.float32)
    topk = sum_gt + (k - count_gt.astype(jnp.float32)) * tau_val
    return jnp.where(k > 0.0, topk, 0.0)


def _balanced_bce_from_parts(neg_loss_map, pos_loss, pos_cnt, neg_cnt, ohem_ratio):
    positive_count = jnp.floor(pos_cnt)          # int() truncation, values >= 0
    negative_total = jnp.floor(neg_cnt)
    has_pos = positive_count > 0.0
    negative_count = jnp.where(
        has_pos,
        jnp.minimum(negative_total, jnp.floor(positive_count * ohem_ratio)),
        jnp.float32(100.0))                      # torch uses k=100 with no positives
    # torch.topk would raise for k > numel (the reference's bare except then
    # returns 0); clamping keeps the loss defined for degenerate tiny maps.
    negative_count = jnp.minimum(negative_count, jnp.float32(neg_loss_map.size))
    positive_loss = jnp.where(has_pos, pos_loss, 0.0)
    topk_sum = _ohem_topk_sum(neg_loss_map, negative_count)
    return (positive_loss + topk_sum) / (positive_count + negative_count + 1e-5)


def lsg_det_loss(pred_maps, downsample_ratio, gt_text_mask=None, gt_head_mask=None,
                 gt_center_mask=None, gt_mask=None, *, ohem_ratio=3.0,
                 with_head=True, loss_text_weight=1.0, loss_head_weight=1.0,
                 loss_center_weight=1.0):
    # TODO(synk): only the with_head=True branch is implemented; the
    # with_head=False multi-level F.interpolate path is not translated.
    assert with_head
    pred = pred_maps[0][0]                       # [N, 3, H, W] logits
    if gt_mask is None:
        gt_mask = jnp.ones_like(gt_text_mask)

    neg_loss_map, stats = _lsg_loss_pallas(
        pred, gt_text_mask, gt_mask, gt_head_mask, gt_center_mask)
    pos_loss, pos_cnt, mask_cnt = stats[0], stats[1], stats[2]
    center_num, head_num, center_sum = stats[3], stats[4], stats[5]
    neg_cnt = mask_cnt - pos_cnt                 # == sum((1 - gt_text) * gt_mask)

    loss_text = _balanced_bce_from_parts(
        neg_loss_map, pos_loss, pos_cnt, neg_cnt, ohem_ratio)

    # loss_center: text_mask == gt_text * gt_mask == "positive" above.
    has_text = jnp.floor(pos_cnt) > 0
    loss_center = jnp.where(has_text,
                            center_num / jnp.where(has_text, pos_cnt, 1.0), 0.0)

    has_center = jnp.floor(center_sum) > 0
    loss_head = jnp.where(has_center,
                          head_num / jnp.where(has_center, center_sum, 1.0), 0.0)

    return dict(loss_text=loss_text_weight * loss_text,
                loss_center=loss_center_weight * loss_center,
                loss_head=loss_head_weight * loss_head)


if __name__ == "__main__":
    key = jax.random.PRNGKey(0)
    N, C, H, W = 2, 3, 32, 32
    k1, k2, k3, k4, k5 = jax.random.split(key, 5)
    # The producing layer can hand the logits over as bf16 (the kernel upcasts
    # on load), halving the dominant HBM read stream.
    pred = jax.random.normal(k1, (N, C, H, W), dtype=jnp.float32).astype(jnp.bfloat16)
    # Ground-truth bitmasks supplied as compact int8 (no wrapper upcasts).
    gt_text = (jax.random.uniform(k2, (N, H, W)) > 0.5).astype(jnp.int8)
    gt_head = (jax.random.uniform(k3, (N, H, W)) > 0.7).astype(jnp.int8)
    gt_center = (jax.random.uniform(k4, (N, H, W)) > 0.6).astype(jnp.int8)
    gt_mask = (jax.random.uniform(k5, (N, H, W)) > 0.1).astype(jnp.int8)

    pred_maps = [[pred]]  # matches forward_single's pred_map[0][0] indexing
    losses = lsg_det_loss(pred_maps, downsample_ratio=1.0,
                          gt_text_mask=gt_text, gt_head_mask=gt_head,
                          gt_center_mask=gt_center, gt_mask=gt_mask)
    jax.block_until_ready(losses)
    print("KERNEL_OK")
</pallas_src>

<mosaic_0001>
module attributes {stable_mosaic.version = 11 : i64} {
  func.func @kernel(%arg0: i32, %arg1: i32, %arg2: i32, %arg3: memref<1x3x32x32xbf16, #tpu.memory_space<vmem>>, %arg4: memref<1x32x32xi8, #tpu.memory_space<vmem>>, %arg5: memref<1x32x32xi8, #tpu.memory_space<vmem>>, %arg6: memref<1x32x32xi8, #tpu.memory_space<vmem>>, %arg7: memref<1x32x32xi8, #tpu.memory_space<vmem>>, %arg8: memref<1x32x32xbf16, #tpu.memory_space<vmem>>, %arg9: memref<8x128xf32, #tpu.memory_space<vmem>>, %arg10: memref<8x128xf32, #tpu.memory_space<vmem>>) attributes {dimension_semantics = [#tpu.dimension_semantics<parallel>, #tpu.dimension_semantics<arbitrary>, #tpu.dimension_semantics<arbitrary>], iteration_bounds = array<i64: 1, 2, 1>, scalar_prefetch = 0 : i64, scratch_operands = 1 : i64, tpu.core_type = #tpu.core_type<tc>, window_params = [{transform_indices = @transform_0, window_bounds = array<i64: 1, 3, 32, 32>}, {transform_indices = @transform_1, window_bounds = array<i64: 1, 32, 32>}, {transform_indices = @transform_2, window_bounds = array<i64: 1, 32, 32>}, {transform_indices = @transform_3, window_bounds = array<i64: 1, 32, 32>}, {transform_indices = @transform_4, window_bounds = array<i64: 1, 32, 32>}, {transform_indices = @transform_5, window_bounds = array<i64: 1, 32, 32>}, {transform_indices = @transform_6, window_bounds = array<i64: 8, 128>}]} {
    %c0_i32 = arith.constant 0 : i32
    %0 = arith.cmpi eq, %arg1, %c0_i32 : i32
    %c0_i32_0 = arith.constant 0 : i32
    %1 = arith.cmpi eq, %arg2, %c0_i32_0 : i32
    %2 = arith.andi %0, %1 : i1
    %3 = arith.extui %2 : i1 to i32
    %c0_i32_1 = arith.constant 0 : i32
    %4 = arith.cmpi ne, %3, %c0_i32_1 : i32
    scf.if %4 {
      %cst_63 = arith.constant 0.000000e+00 : f32
      %159 = vector.broadcast %cst_63 : f32 to vector<8x128xf32>
      %c0_64 = arith.constant 0 : index
      %c0_65 = arith.constant 0 : index
      %160 = vector.load %arg10[%c0_64, %c0_65] : memref<8x128xf32, #tpu.memory_space<vmem>>, vector<8x128xf32>
      tpu.vector_store %arg10[%c0_64, %c0_65], %159 {strides = array<i32>} : memref<8x128xf32, #tpu.memory_space<vmem>>, vector<8x128xf32>,
    } else {
    }
    %c0 = arith.constant 0 : index
    %c0_2 = arith.constant 0 : index
    %c0_3 = arith.constant 0 : index
    %c0_4 = arith.constant 0 : index
    %5 = vector.load %arg3[%c0, %c0_2, %c0_3, %c0_4] : memref<1x3x32x32xbf16, #tpu.memory_space<vmem>>, vector<1x1x32x32xbf16>
    %6 = vector.shape_cast %5 : vector<1x1x32x32xbf16> to vector<32x32xbf16>
    %7 = arith.extf %6 : vector<32x32xbf16> to vector<32x32xf32>
    %c0_5 = arith.constant 0 : index
    %c1 = arith.constant 1 : index
    %c0_6 = arith.constant 0 : index
    %c0_7 = arith.constant 0 : index
    %8 = vector.load %arg3[%c0_5, %c1, %c0_6, %c0_7] : memref<1x3x32x32xbf16, #tpu.memory_space<vmem>>, vector<1x1x32x32xbf16>
    %9 = vector.shape_cast %8 : vector<1x1x32x32xbf16> to vector<32x32xbf16>
    %10 = arith.extf %9 : vector<32x32xbf16> to vector<32x32xf32>
    %c0_8 = arith.constant 0 : index
    %c2 = arith.constant 2 : index
    %c0_9 = arith.constant 0 : index
    %c0_10 = arith.constant 0 : index
    %11 = vector.load %arg3[%c0_8, %c2, %c0_9, %c0_10] : memref<1x3x32x32xbf16, #tpu.memory_space<vmem>>, vector<1x1x32x32xbf16>
    %12 = vector.shape_cast %11 : vector<1x1x32x32xbf16> to vector<32x32xbf16>
    %13 = arith.extf %12 : vector<32x32xbf16> to vector<32x32xf32>
    %c0_11 = arith.constant 0 : index
    %c0_12 = arith.constant 0 : index
    %c0_13 = arith.constant 0 : index
    %14 = vector.load %arg4[%c0_11, %c0_12, %c0_13] : memref<1x32x32xi8, #tpu.memory_space<vmem>>, vector<1x32x32xi8>
    %15 = vector.shape_cast %14 : vector<1x32x32xi8> to vector<32x32xi8>
    %16 = arith.sitofp %15 : vector<32x32xi8> to vector<32x32xf32>
    %c0_14 = arith.constant 0 : index
    %c0_15 = arith.constant 0 : index
    %c0_16 = arith.constant 0 : index
    %17 = vector.load %arg5[%c0_14, %c0_15, %c0_16] : memref<1x32x32xi8, #tpu.memory_space<vmem>>, vector<1x32x32xi8>
    %18 = vector.shape_cast %17 : vector<1x32x32xi8> to vector<32x32xi8>
    %19 = arith.sitofp %18 : vector<32x32xi8> to vector<32x32xf32>
    %c0_17 = arith.constant 0 : index
    %c0_18 = arith.constant 0 : index
    %c0_19 = arith.constant 0 : index
    %20 = vector.load %arg6[%c0_17, %c0_18, %c0_19] : memref<1x32x32xi8, #tpu.memory_space<vmem>>, vector<1x32x32xi8>
    %21 = vector.shape_cast %20 : vector<1x32x32xi8> to vector<32x32xi8>
    %22 = arith.sitofp %21 : vector<32x32xi8> to vector<32x32xf32>
    %c0_20 = arith.constant 0 : index
    %c0_21 = arith.constant 0 : index
    %c0_22 = arith.constant 0 : index
    %23 = vector.load %arg7[%c0_20, %c0_21, %c0_22] : memref<1x32x32xi8, #tpu.memory_space<vmem>>, vector<1x32x32xi8>
    %24 = vector.shape_cast %23 : vector<1x32x32xi8> to vector<32x32xi8>
    %25 = arith.sitofp %24 : vector<32x32xi8> to vector<32x32xf32>
    %26 = arith.mulf %16, %19 : vector<32x32xf32>
    %27 = arith.subf %19, %26 : vector<32x32xf32>
    %cst = arith.constant 0.000000e+00 : f32
    %28 = vector.broadcast %cst : f32 to vector<32x32xf32>
    %29 = arith.maximumf %7, %28 : vector<32x32xf32>
    %30 = arith.mulf %7, %16 : vector<32x32xf32>
    %31 = arith.subf %29, %30 : vector<32x32xf32>
    %32 = math.absf %7 : vector<32x32xf32>
    %cst_23 = arith.constant 0.000000e+00 : f32
    %33 = vector.broadcast %cst_23 : f32 to vector<32x32xf32>
    %34 = arith.subf %33, %32 : vector<32x32xf32>
    %35 = math.exp %34 : vector<32x32xf32>
    %cst_24 = arith.constant 1.000000e+00 : f32
    %36 = vector.broadcast %cst_24 : f32 to vector<32x32xf32>
    %37 = arith.addf %36, %35 : vector<32x32xf32>
    %38 = math.log %37 : vector<32x32xf32>
    %39 = arith.addf %31, %38 : vector<32x32xf32>
    %cst_25 = arith.constant 1.000000e+02 : f32
    %40 = vector.broadcast %cst_25 : f32 to vector<32x32xf32>
    %41 = arith.minimumf %39, %40 : vector<32x32xf32>
    %42 = arith.mulf %41, %27 : vector<32x32xf32>
    %43 = arith.truncf %42 : vector<32x32xf32> to vector<32x32xbf16>
    %c0_26 = arith.constant 0 : index
    %c0_27 = arith.constant 0 : index
    %c0_28 = arith.constant 0 : index
    %44 = vector.load %arg8[%c0_26, %c0_27, %c0_28] : memref<1x32x32xbf16, #tpu.memory_space<vmem>>, vector<1x32x32xbf16>
    %45 = vector.shape_cast %44 : vector<1x32x32xbf16> to vector<32x32xbf16>
    %46 = vector.shape_cast %43 : vector<32x32xbf16> to vector<1x32x32xbf16>
    tpu.vector_store %arg8[%c0_26, %c0_27, %c0_28], %46 {strides = array<i32>} : memref<1x32x32xbf16, #tpu.memory_space<vmem>>, vector<1x32x32xbf16>,
    %cst_29 = arith.constant 0.000000e+00 : f32
    %47 = vector.broadcast %cst_29 : f32 to vector<32x32xf32>
    %48 = arith.maximumf %13, %47 : vector<32x32xf32>
    %49 = arith.mulf %13, %25 : vector<32x32xf32>
    %50 = arith.subf %48, %49 : vector<32x32xf32>
    %51 = math.absf %13 : vector<32x32xf32>
    %cst_30 = arith.constant 0.000000e+00 : f32
    %52 = vector.broadcast %cst_30 : f32 to vector<32x32xf32>
    %53 = arith.subf %52, %51 : vector<32x32xf32>
    %54 = math.exp %53 : vector<32x32xf32>
    %cst_31 = arith.constant 1.000000e+00 : f32
    %55 = vector.broadcast %cst_31 : f32 to vector<32x32xf32>
    %56 = arith.addf %55, %54 : vector<32x32xf32>
    %57 = math.log %56 : vector<32x32xf32>
    %58 = arith.addf %50, %57 : vector<32x32xf32>
    %cst_32 = arith.constant 1.000000e+02 : f32
    %59 = vector.broadcast %cst_32 : f32 to vector<32x32xf32>
    %60 = arith.minimumf %58, %59 : vector<32x32xf32>
    %61 = arith.negf %10 : vector<32x32xf32>
    %62 = math.exp %61 : vector<32x32xf32>
    %cst_33 = arith.constant 1.000000e+00 : f32
    %63 = vector.broadcast %cst_33 : f32 to vector<32x32xf32>
    %64 = arith.addf %63, %62 : vector<32x32xf32>
    %65 = arith.divf %63, %64 : vector<32x32xf32>
    %66 = arith.subf %65, %22 : vector<32x32xf32>
    %67 = math.absf %66 : vector<32x32xf32>
    %cst_34 = arith.constant 1.000000e+00 : f32
    %68 = vector.broadcast %cst_34 : f32 to vector<32x32xf32>
    %69 = arith.cmpf olt, %67, %68 : vector<32x32xf32>
    %cst_35 = arith.constant 5.000000e-01 : f32
    %70 = vector.broadcast %cst_35 : f32 to vector<32x32xf32>
    %71 = arith.mulf %70, %66 : vector<32x32xf32>
    %72 = arith.mulf %71, %66 : vector<32x32xf32>
    %cst_36 = arith.constant 5.000000e-01 : f32
    %73 = vector.broadcast %cst_36 : f32 to vector<32x32xf32>
    %74 = arith.subf %67, %73 : vector<32x32xf32>
    %75 = arith.select %69, %72, %74 : vector<32x32xi1>, vector<32x32xf32>
    %76 = arith.mulf %41, %26 : vector<32x32xf32>
    %cst_37 = arith.constant dense<0.000000e+00> : vector<32xf32>
    %77 = vector.multi_reduction <add>, %76, %cst_37 [1] : vector<32x32xf32> to vector<32xf32>
    %78 = vector.shape_cast %77 : vector<32xf32> to vector<32x1xf32>
    %79 = vector.shape_cast %78 : vector<32x1xf32> to vector<1x32x1xf32>
    %cst_38 = arith.constant dense<0.000000e+00> : vector<1xf32>
    %80 = vector.multi_reduction <add>, %79, %cst_38 [1, 2] : vector<1x32x1xf32> to vector<1xf32>
    %81 = vector.shape_cast %80 : vector<1xf32> to vector<1x1x1xf32>
    %82 = vector.extract %81[0, 0, 0] : f32 from vector<1x1x1xf32>
    %cst_39 = arith.constant dense<0.000000e+00> : vector<32xf32>
    %83 = vector.multi_reduction <add>, %26, %cst_39 [1] : vector<32x32xf32> to vector<32xf32>
    %84 = vector.shape_cast %83 : vector<32xf32> to vector<32x1xf32>
    %85 = vector.shape_cast %84 : vector<32x1xf32> to vector<1x32x1xf32>
    %cst_40 = arith.constant dense<0.000000e+00> : vector<1xf32>
    %86 = vector.multi_reduction <add>, %85, %cst_40 [1, 2] : vector<1x32x1xf32> to vector<1xf32>
    %87 = vector.shape_cast %86 : vector<1xf32> to vector<1x1x1xf32>
    %88 = vector.extract %87[0, 0, 0] : f32 from vector<1x1x1xf32>
    %cst_41 = arith.constant dense<0.000000e+00> : vector<32xf32>
    %89 = vector.multi_reduction <add>, %19, %cst_41 [1] : vector<32x32xf32> to vector<32xf32>
    %90 = vector.shape_cast %89 : vector<32xf32> to vector<32x1xf32>
    %91 = vector.shape_cast %90 : vector<32x1xf32> to vector<1x32x1xf32>
    %cst_42 = arith.constant dense<0.000000e+00> : vector<1xf32>
    %92 = vector.multi_reduction <add>, %91, %cst_42 [1, 2] : vector<1x32x1xf32> to vector<1xf32>
    %93 = vector.shape_cast %92 : vector<1xf32> to vector<1x1x1xf32>
    %94 = vector.extract %93[0, 0, 0] : f32 from vector<1x1x1xf32>
    %95 = arith.mulf %60, %26 : vector<32x32xf32>
    %cst_43 = arith.constant dense<0.000000e+00> : vector<32xf32>
    %96 = vector.multi_reduction <add>, %95, %cst_43 [1] : vector<32x32xf32> to vector<32xf32>
    %97 = vector.shape_cast %96 : vector<32xf32> to vector<32x1xf32>
    %98 = vector.shape_cast %97 : vector<32x1xf32> to vector<1x32x1xf32>
    %cst_44 = arith.constant dense<0.000000e+00> : vector<1xf32>
    %99 = vector.multi_reduction <add>, %98, %cst_44 [1, 2] : vector<1x32x1xf32> to vector<1xf32>
    %100 = vector.shape_cast %99 : vector<1xf32> to vector<1x1x1xf32>
    %101 = vector.extract %100[0, 0, 0] : f32 from vector<1x1x1xf32>
    %102 = arith.mulf %75, %25 : vector<32x32xf32>
    %cst_45 = arith.constant dense<0.000000e+00> : vector<32xf32>
    %103 = vector.multi_reduction <add>, %102, %cst_45 [1] : vector<32x32xf32> to vector<32xf32>
    %104 = vector.shape_cast %103 : vector<32xf32> to vector<32x1xf32>
    %105 = vector.shape_cast %104 : vector<32x1xf32> to vector<1x32x1xf32>
    %cst_46 = arith.constant dense<0.000000e+00> : vector<1xf32>
    %106 = vector.multi_reduction <add>, %105, %cst_46 [1, 2] : vector<1x32x1xf32> to vector<1xf32>
    %107 = vector.shape_cast %106 : vector<1xf32> to vector<1x1x1xf32>
    %108 = vector.extract %107[0, 0, 0] : f32 from vector<1x1x1xf32>
    %cst_47 = arith.constant dense<0.000000e+00> : vector<32xf32>
    %109 = vector.multi_reduction <add>, %25, %cst_47 [1] : vector<32x32xf32> to vector<32xf32>
    %110 = vector.shape_cast %109 : vector<32xf32> to vector<32x1xf32>
    %111 = vector.shape_cast %110 : vector<32x1xf32> to vector<1x32x1xf32>
    %cst_48 = arith.constant dense<0.000000e+00> : vector<1xf32>
    %112 = vector.multi_reduction <add>, %111, %cst_48 [1, 2] : vector<1x32x1xf32> to vector<1xf32>
    %113 = vector.shape_cast %112 : vector<1xf32> to vector<1x1x1xf32>
    %114 = vector.extract %113[0, 0, 0] : f32 from vector<1x1x1xf32>
    %115 = tpu.iota {dimensions = array<i32: 0>} : vector<8x128xi32>
    %c0_49 = arith.constant 0 : index
    %c0_50 = arith.constant 0 : index
    %116 = vector.load %arg10[%c0_49, %c0_50] : memref<8x128xf32, #tpu.memory_space<vmem>>, vector<8x128xf32>
    %c0_i32_51 = arith.constant 0 : i32
    %117 = vector.broadcast %c0_i32_51 : i32 to vector<8x128xi32>
    %118 = arith.cmpi eq, %115, %117 : vector<8x128xi32>
    %cst_52 = arith.constant 0.000000e+00 : f32
    %119 = vector.broadcast %82 : f32 to vector<8x128xf32>
    %120 = vector.broadcast %cst_52 : f32 to vector<8x128xf32>
    %121 = arith.select %118, %119, %120 : vector<8x128xi1>, vector<8x128xf32>
    %c1_i32 = arith.constant 1 : i32
    %122 = vector.broadcast %c1_i32 : i32 to vector<8x128xi32>
    %123 = arith.cmpi eq, %115, %122 : vector<8x128xi32>
    %cst_53 = arith.constant 0.000000e+00 : f32
    %124 = vector.broadcast %88 : f32 to vector<8x128xf32>
    %125 = vector.broadcast %cst_53 : f32 to vector<8x128xf32>
    %126 = arith.select %123, %124, %125 : vector<8x128xi1>, vector<8x128xf32>
    %127 = arith.addf %121, %126 : vector<8x128xf32>
    %c2_i32 = arith.constant 2 : i32
    %128 = vector.broadcast %c2_i32 : i32 to vector<8x128xi32>
    %129 = arith.cmpi eq, %115, %128 : vector<8x128xi32>
    %cst_54 = arith.constant 0.000000e+00 : f32
    %130 = vector.broadcast %94 : f32 to vector<8x128xf32>
    %131 = vector.broadcast %cst_54 : f32 to vector<8x128xf32>
    %132 = arith.select %129, %130, %131 : vector<8x128xi1>, vector<8x128xf32>
    %133 = arith.addf %127, %132 : vector<8x128xf32>
    %c3_i32 = arith.constant 3 : i32
    %134 = vector.broadcast %c3_i32 : i32 to vector<8x128xi32>
    %135 = arith.cmpi eq, %115, %134 : vector<8x128xi32>
    %cst_55 = arith.constant 0.000000e+00 : f32
    %136 = vector.broadcast %101 : f32 to vector<8x128xf32>
    %137 = vector.broadcast %cst_55 : f32 to vector<8x128xf32>
    %138 = arith.select %135, %136, %137 : vector<8x128xi1>, vector<8x128xf32>
    %139 = arith.addf %133, %138 : vector<8x128xf32>
    %c4_i32 = arith.constant 4 : i32
    %140 = vector.broadcast %c4_i32 : i32 to vector<8x128xi32>
    %141 = arith.cmpi eq, %115, %140 : vector<8x128xi32>
    %cst_56 = arith.constant 0.000000e+00 : f32
    %142 = vector.broadcast %108 : f32 to vector<8x128xf32>
    %143 = vector.broadcast %cst_56 : f32 to vector<8x128xf32>
    %144 = arith.select %141, %142, %143 : vector<8x128xi1>, vector<8x128xf32>
    %145 = arith.addf %139, %144 : vector<8x128xf32>
    %c5_i32 = arith.constant 5 : i32
    %146 = vector.broadcast %c5_i32 : i32 to vector<8x128xi32>
    %147 = arith.cmpi eq, %115, %146 : vector<8x128xi32>
    %cst_57 = arith.constant 0.000000e+00 : f32
    %148 = vector.broadcast %114 : f32 to vector<8x128xf32>
    %149 = vector.broadcast %cst_57 : f32 to vector<8x128xf32>
    %150 = arith.select %147, %148, %149 : vector<8x128xi1>, vector<8x128xf32>
    %151 = arith.addf %145, %150 : vector<8x128xf32>
    %152 = arith.addf %116, %151 : vector<8x128xf32>
    %c0_58 = arith.constant 0 : index
    %c0_59 = arith.constant 0 : index
    %153 = vector.load %arg10[%c0_58, %c0_59] : memref<8x128xf32, #tpu.memory_space<vmem>>, vector<8x128xf32>
    tpu.vector_store %arg10[%c0_58, %c0_59], %152 {strides = array<i32>} : memref<8x128xf32, #tpu.memory_space<vmem>>, vector<8x128xf32>,
    %c1_i32_60 = arith.constant 1 : i32
    %154 = arith.cmpi eq, %arg1, %c1_i32_60 : i32
    %c0_i32_61 = arith.constant 0 : i32
    %155 = arith.cmpi eq, %arg2, %c0_i32_61 : i32
    %156 = arith.andi %154, %155 : i1
    %157 = arith.extui %156 : i1 to i32
    %c0_i32_62 = arith.constant 0 : i32
    %158 = arith.cmpi ne, %157, %c0_i32_62 : i32
    scf.if %158 {
      %c0_63 = arith.constant 0 : index
      %c0_64 = arith.constant 0 : index
      %159 = vector.load %arg10[%c0_63, %c0_64] : memref<8x128xf32, #tpu.memory_space<vmem>>, vector<8x128xf32>
      %c0_65 = arith.constant 0 : index
      %c0_66 = arith.constant 0 : index
      %160 = vector.load %arg9[%c0_65, %c0_66] : memref<8x128xf32, #tpu.memory_space<vmem>>, vector<8x128xf32>
      tpu.vector_store %arg9[%c0_65, %c0_66], %159 {strides = array<i32>} : memref<8x128xf32, #tpu.memory_space<vmem>>, vector<8x128xf32>,
    } else {
    }
    return
  }
  func.func @transform_0(%arg0: i32, %arg1: i32, %arg2: i32) -> (i32, i32, i32, i32) {
    %c1_i32 = arith.constant 1 : i32
    %0 = arith.muli %arg0, %c1_i32 : i32
    %1 = arith.addi %0, %arg2 : i32
    %c0_i32 = arith.constant 0 : i32
    %2 = arith.minsi %1, %c0_i32 : i32
    %c0_i32_0 = arith.constant 0 : i32
    %c0_i32_1 = arith.constant 0 : i32
    %c0_i32_2 = arith.constant 0 : i32
    return %arg1, %c0_i32_0, %2, %c0_i32_1 : i32, i32, i32, i32
  }
  func.func @transform_1(%arg0: i32, %arg1: i32, %arg2: i32) -> (i32, i32, i32) {
    %c1_i32 = arith.constant 1 : i32
    %0 = arith.muli %arg0, %c1_i32 : i32
    %1 = arith.addi %0, %arg2 : i32
    %c0_i32 = arith.constant 0 : i32
    %2 = arith.minsi %1, %c0_i32 : i32
    %c0_i32_0 = arith.constant 0 : i32
    %c0_i32_1 = arith.constant 0 : i32
    return %arg1, %2, %c0_i32_0 : i32, i32, i32
  }
  func.func @transform_2(%arg0: i32, %arg1: i32, %arg2: i32) -> (i32, i32, i32) {
    %c1_i32 = arith.constant 1 : i32
    %0 = arith.muli %arg0, %c1_i32 : i32
    %1 = arith.addi %0, %arg2 : i32
    %c0_i32 = arith.constant 0 : i32
    %2 = arith.minsi %1, %c0_i32 : i32
    %c0_i32_0 = arith.constant 0 : i32
    %c0_i32_1 = arith.constant 0 : i32
    return %arg1, %2, %c0_i32_0 : i32, i32, i32
  }
  func.func @transform_3(%arg0: i32, %arg1: i32, %arg2: i32) -> (i32, i32, i32) {
    %c1_i32 = arith.constant 1 : i32
    %0 = arith.muli %arg0, %c1_i32 : i32
    %1 = arith.addi %0, %arg2 : i32
    %c0_i32 = arith.constant 0 : i32
    %2 = arith.minsi %1, %c0_i32 : i32
    %c0_i32_0 = arith.constant 0 : i32
    %c0_i32_1 = arith.constant 0 : i32
    return %arg1, %2, %c0_i32_0 : i32, i32, i32
  }
  func.func @transform_4(%arg0: i32, %arg1: i32, %arg2: i32) -> (i32, i32, i32) {
    %c1_i32 = arith.constant 1 : i32
    %0 = arith.muli %arg0, %c1_i32 : i32
    %1 = arith.addi %0, %arg2 : i32
    %c0_i32 = arith.constant 0 : i32
    %2 = arith.minsi %1, %c0_i32 : i32
    %c0_i32_0 = arith.constant 0 : i32
    %c0_i32_1 = arith.constant 0 : i32
    return %arg1, %2, %c0_i32_0 : i32, i32, i32
  }
  func.func @transform_5(%arg0: i32, %arg1: i32, %arg2: i32) -> (i32, i32, i32) {
    %c1_i32 = arith.constant 1 : i32
    %0 = arith.muli %arg0, %c1_i32 : i32
    %1 = arith.addi %0, %arg2 : i32
    %c0_i32 = arith.constant 0 : i32
    %2 = arith.minsi %1, %c0_i32 : i32
    %c0_i32_0 = arith.constant 0 : i32
    %c0_i32_1 = arith.constant 0 : i32
    return %arg1, %2, %c0_i32_0 : i32, i32, i32
  }
  func.func @transform_6(%arg0: i32, %arg1: i32, %arg2: i32) -> (i32, i32) {
    %c0_i32 = arith.constant 0 : i32
    %c0_i32_0 = arith.constant 0 : i32
    return %arg0, %c0_i32 : i32, i32
  }
}

</mosaic_0001>

<llo_original>
// kernel: tpu_custom_call.1
$region0: #{tpu_custom_call.1}
  #allocation0 [shape = 'u32[]', space=smem, size = 0x4, offset = 0x4, fixed_abs, tag = 'smem constant byte address 0x4 - core index']
  #allocation1 [shape = 'u32[144,128]{1,0:T(1,128)}', space=vmem, size = 0x12000, scoped, tag = 'internal scratch']
  #allocation2 [shape = 'f32[8,128]{1,0:T(8,128)}', space=vmem, size = 0x1000, scoped, tag = 'scratch operand']
  %s0 = inlined_call_operand.hbm [shape: bf16[2,3,32,32], index: 0, kind: input, shape index: {}]
  %s1 = inlined_call_operand.hbm [shape: s8[2,32,32], index: 1, kind: input, shape index: {}]
  %s2 = inlined_call_operand.hbm [shape: s8[2,32,32], index: 2, kind: input, shape index: {}]
  %s3 = inlined_call_operand.hbm [shape: s8[2,32,32], index: 3, kind: input, shape index: {}]
  %s4 = inlined_call_operand.hbm [shape: s8[2,32,32], index: 4, kind: input, shape index: {}]
  %s5 = inlined_call_operand.hbm [shape: bf16[2,32,32], index: 5, kind: output, shape index: {0}]
  %s6 = inlined_call_operand.hbm [shape: f32[8,128], index: 6, kind: output, shape index: {1}]
  %7 = xla_tuple %s5, %s6
  %s8 = sld [smem:[#allocation0]]
  $region89: #{tpu_custom_call.1} parent=0
    _
  %s10 = ssub.s32 1, %s8
  %s11 = scalar_select 0, %s10, %s8
  $region1: #{tpu_custom_call.1} parent=0
    #allocation3 [shape = 'u8[49152]{0}', space=vmem, size = 0xc000, scoped, tag = 'input window, operand 0']
    #allocation4 [shape = 's32[2]{0}', space=sflag, size = 0x8, scoped, tag = 'scoped memory for tpu_custom_call.1']
    #allocation5 [shape = 's32[2]{0}', space=sflag, size = 0x8, scoped, tag = 'scoped memory for tpu_custom_call.1']
    #allocation6 [shape = 'u8[8192]{0}', space=vmem, size = 0x2000, scoped, tag = 'input window, operand 1']
    #allocation7 [shape = 's32[2]{0}', space=sflag, size = 0x8, scoped, tag = 'scoped memory for tpu_custom_call.1']
    #allocation8 [shape = 'u8[8192]{0}', space=vmem, size = 0x2000, scoped, tag = 'input window, operand 2']
    #allocation9 [shape = 'u8[8192]{0}', space=vmem, size = 0x2000, scoped, tag = 'input window, operand 3']
    #allocation10 [shape = 's32[2]{0}', space=sflag, size = 0x8, scoped, tag = 'scoped memory for tpu_custom_call.1']
    #allocation11 [shape = 'u8[8192]{0}', space=vmem, size = 0x2000, scoped, tag = 'input window, operand 4']
    #allocation12 [shape = 'u8[16384]{0}', space=vmem, size = 0x4000, scoped, tag = 'output window, operand 0']
    #allocation13 [shape = 'u8[4096]{0}', space=vmem, size = 0x1000, scoped, tag = 'output window, operand 1, single buffered']
    #allocation14 [shape = 's32[1]{0}', space=sflag, size = 0x4, scoped, tag = 'scoped memory for tpu_custom_call.1']
    %12 = vsyncpa [#allocation4], 0
    %s13 = scalar_lea.sflag [#allocation4], 1
    %14 = vsyncpa %s13, 0
    %15 = vsyncpa [#allocation7], 0
    %s16 = scalar_lea.sflag [#allocation7], 1
    %17 = vsyncpa %s16, 0
    %18 = vsyncpa [#allocation10], 0
    %s19 = scalar_lea.sflag [#allocation10], 1
    %20 = vsyncpa %s19, 0
    %21 = vsyncpa [#allocation5], 0
    %s22 = scalar_lea.sflag [#allocation5], 1
    %23 = vsyncpa %s22, 0
    %24 = vsyncpa [#allocation14], 0
    loop: start=0, step=1, limit=4
    $region2: #{tpu_custom_call.1} parent=1 // loop_pre_header
      _
    $region3: #{tpu_custom_call.1} parent=1 // loop_header
      %s26 = sphi 0, %s30
      %p27 = scmp.ge.s32.totalorder %s26, 4
      %s33 = sphi 0, %s52
      %s34 = sphi 0, %s48
      %s35 = sphi 0, %s44
      %s36 = sphi 0, %s33
      %s37 = sphi 0, %s34
      %s38 = sphi 0, %s35
      %s39 = sphi 0, %s36
      %s40 = sphi 0, %s37
      %s41 = sphi 0, %s38
      %s63 = sphi 0, %s65
      %s66 = sphi 0, %s63
      %s67 = sphi 0, %s66
      %s83 = sphi 0, %s67
      %s97 = sphi 0, %s99
      %s100 = sphi 0, %s97
      %s101 = sphi 0, %s100
      %s117 = sphi 0, %s101
      %s131 = sphi 0, %s133
      %s134 = sphi 0, %s131
      %s135 = sphi 0, %s134
      %s151 = sphi 0, %s135
      %s165 = sphi 0, %s167
      %s168 = sphi 0, %s165
      %s169 = sphi 0, %s168
      %s185 = sphi 0, %s169
      %s199 = sphi 0, %s201
      %s202 = sphi 0, %s199
      %s203 = sphi 0, %s202
      %s219 = sphi 0, %s203
      %s233 = sphi 0, %s235
      %s236 = sphi 0, %s233
      %s237 = sphi 0, %s236
      %s253 = sphi 0, %s237
      %s259 = sphi 0, %s261
      %s262 = sphi 0, %s259
      %s263 = sphi 0, %s262
      %s279 = sphi 0, %s263
    $region4: #{tpu_custom_call.1} parent=1 // loop_header_branch
      %29 = sbr.rel (%p27) target = $region8
    $region5: #{tpu_custom_call.1} parent=1 // loop_body
      %s31 = ssub.s32 %s26, 1
      %s32 = ssub.s32 %s26, 2
      %s42 = sadd.s32 1, %s35
      %p43 = scmp.ge.s32.totalorder %s42, 1
      %s44 = scalar_select %p43, 0, %s42
      %s45 = sadd.s32 1, %s34
      %s46 = scalar_select %p43, %s45, %s34
      %p47 = scmp.ge.s32.totalorder %s46, 2
      %s48 = scalar_select %p47, 0, %s46
      %s49 = sadd.s32 1, %s33
      %s50 = scalar_select %p47, %s49, %s33
      %p51 = scmp.ge.s32.totalorder %s50, 1
      %s52 = scalar_select %p51, 0, %s50
      %s53 = sadd.s32 %s33, %s35
      %p54 = scmp.lt.s32.totalorder %s53, 0
      %s55 = scalar_select %p54, %s53, 0
      %s56 = sadd.s32 %s52, %s44
      %p57 = scmp.lt.s32.totalorder %s56, 0
      %s58 = scalar_select %p57, %s56, 0
      %s59 = ssub.s32 %s34, %s48
      %s60 = ssub.s32 %s55, %s58
      %s61 = sor.u32 %s59, %s60
      %p62 = scmp.eq.s32.totalorder %s61, 0
      %s64 = sadd.s32 %s63, 1
      %s65 = scalar_select %p62, %s63, %s64
      %p68 = pneg %p62
      %p69 = scmp.eq.s32.totalorder %s26, 1
      %p70 = por %p68, %p69
      %p71 = scmp.ne.s32.totalorder %s63, %s66
      %p72 = scmp.eq.s32.totalorder %s26, 0
      %p73 = por %p71, %p72
      %p74 = scmp.ne.s32.totalorder %s63, %s66
      %p75 = scmp.eq.s32.totalorder %s31, 1
      %p76 = por %p74, %p75
      %p77 = scmp.ne.s32.totalorder %s66, %s67
      %p78 = scmp.eq.s32.totalorder %s31, 0
      %p79 = por %p77, %p78
      %p80 = scmp.ne.s32.totalorder %s66, %s67
      %p81 = scmp.eq.s32.totalorder %s32, 1
      %p82 = por %p80, %p81
      %p84 = scmp.ne.s32.totalorder %s67, %s83
      %p85 = scmp.eq.s32.totalorder %s32, 0
      %p86 = por %p84, %p85
      %s87 = sadd.s32 %s33, %s35
      %p88 = scmp.lt.s32.totalorder %s87, 0
      %s89 = scalar_select %p88, %s87, 0
      %s90 = sadd.s32 %s52, %s44
      %p91 = scmp.lt.s32.totalorder %s90, 0
      %s92 = scalar_select %p91, %s90, 0
      %s93 = ssub.s32 %s34, %s48
      %s94 = ssub.s32 %s89, %s92
      %s95 = sor.u32 %s93, %s94
      %p96 = scmp.eq.s32.totalorder %s95, 0
      %s98 = sadd.s32 %s97, 1
      %s99 = scalar_select %p96, %s97, %s98
      %p102 = pneg %p96
      %p103 = scmp.eq.s32.totalorder %s26, 1
      %p104 = por %p102, %p103
      %p105 = scmp.ne.s32.totalorder %s97, %s100
      %p106 = scmp.eq.s32.totalorder %s26, 0
      %p107 = por %p105, %p106
      %p108 = scmp.ne.s32.totalorder %s97, %s100
      %p109 = scmp.eq.s32.totalorder %s31, 1
      %p110 = por %p108, %p109
      %p111 = scmp.ne.s32.totalorder %s100, %s101
      %p112 = scmp.eq.s32.totalorder %s31, 0
      %p113 = por %p111, %p112
      %p114 = scmp.ne.s32.totalorder %s100, %s101
      %p115 = scmp.eq.s32.totalorder %s32, 1
      %p116 = por %p114, %p115
      %p118 = scmp.ne.s32.totalorder %s101, %s117
      %p119 = scmp.eq.s32.totalorder %s32, 0
      %p120 = por %p118, %p119
      %s121 = sadd.s32 %s33, %s35
      %p122 = scmp.lt.s32.totalorder %s121, 0
      %s123 = scalar_select %p122, %s121, 0
      %s124 = sadd.s32 %s52, %s44
      %p125 = scmp.lt.s32.totalorder %s124, 0
      %s126 = scalar_select %p125, %s124, 0
      %s127 = ssub.s32 %s34, %s48
      %s128 = ssub.s32 %s123, %s126
      %s129 = sor.u32 %s127, %s128
      %p130 = scmp.eq.s32.totalorder %s129, 0
      %s132 = sadd.s32 %s131, 1
      %s133 = scalar_select %p130, %s131, %s132
      %p136 = pneg %p130
      %p137 = scmp.eq.s32.totalorder %s26, 1
      %p138 = por %p136, %p137
      %p139 = scmp.ne.s32.totalorder %s131, %s134
      %p140 = scmp.eq.s32.totalorder %s26, 0
      %p141 = por %p139, %p140
      %p142 = scmp.ne.s32.totalorder %s131, %s134
      %p143 = scmp.eq.s32.totalorder %s31, 1
      %p144 = por %p142, %p143
      %p145 = scmp.ne.s32.totalorder %s134, %s135
      %p146 = scmp.eq.s32.totalorder %s31, 0
      %p147 = por %p145, %p146
      %p148 = scmp.ne.s32.totalorder %s134, %s135
      %p149 = scmp.eq.s32.totalorder %s32, 1
      %p150 = por %p148, %p149
      %p152 = scmp.ne.s32.totalorder %s135, %s151
      %p153 = scmp.eq.s32.totalorder %s32, 0
      %p154 = por %p152, %p153
      %s155 = sadd.s32 %s33, %s35
      %p156 = scmp.lt.s32.totalorder %s155, 0
      %s157 = scalar_select %p156, %s155, 0
      %s158 = sadd.s32 %s52, %s44
      %p159 = scmp.lt.s32.totalorder %s158, 0
      %s160 = scalar_select %p159, %s158, 0
      %s161 = ssub.s32 %s34, %s48
      %s162 = ssub.s32 %s157, %s160
      %s163 = sor.u32 %s161, %s162
      %p164 = scmp.eq.s32.totalorder %s163, 0
      %s166 = sadd.s32 %s165, 1
      %s167 = scalar_select %p164, %s165, %s166
      %p170 = pneg %p164
      %p171 = scmp.eq.s32.totalorder %s26, 1
      %p172 = por %p170, %p171
      %p173 = scmp.ne.s32.totalorder %s165, %s168
      %p174 = scmp.eq.s32.totalorder %s26, 0
      %p175 = por %p173, %p174
      %p176 = scmp.ne.s32.totalorder %s165, %s168
      %p177 = scmp.eq.s32.totalorder %s31, 1
      %p178 = por %p176, %p177
      %p179 = scmp.ne.s32.totalorder %s168, %s169
      %p180 = scmp.eq.s32.totalorder %s31, 0
      %p181 = por %p179, %p180
      %p182 = scmp.ne.s32.totalorder %s168, %s169
      %p183 = scmp.eq.s32.totalorder %s32, 1
      %p184 = por %p182, %p183
      %p186 = scmp.ne.s32.totalorder %s169, %s185
      %p187 = scmp.eq.s32.totalorder %s32, 0
      %p188 = por %p186, %p187
      %s189 = sadd.s32 %s33, %s35
      %p190 = scmp.lt.s32.totalorder %s189, 0
      %s191 = scalar_select %p190, %s189, 0
      %s192 = sadd.s32 %s52, %s44
      %p193 = scmp.lt.s32.totalorder %s192, 0
      %s194 = scalar_select %p193, %s192, 0
      %s195 = ssub.s32 %s34, %s48
      %s196 = ssub.s32 %s191, %s194
      %s197 = sor.u32 %s195, %s196
      %p198 = scmp.eq.s32.totalorder %s197, 0
      %s200 = sadd.s32 %s199, 1
      %s201 = scalar_select %p198, %s199, %s200
      %p204 = pneg %p198
      %p205 = scmp.eq.s32.totalorder %s26, 1
      %p206 = por %p204, %p205
      %p207 = scmp.ne.s32.totalorder %s199, %s202
      %p208 = scmp.eq.s32.totalorder %s26, 0
      %p209 = por %p207, %p208
      %p210 = scmp.ne.s32.totalorder %s199, %s202
      %p211 = scmp.eq.s32.totalorder %s31, 1
      %p212 = por %p210, %p211
      %p213 = scmp.ne.s32.totalorder %s202, %s203
      %p214 = scmp.eq.s32.totalorder %s31, 0
      %p215 = por %p213, %p214
      %p216 = scmp.ne.s32.totalorder %s202, %s203
      %p217 = scmp.eq.s32.totalorder %s32, 1
      %p218 = por %p216, %p217
      %p220 = scmp.ne.s32.totalorder %s203, %s219
      %p221 = scmp.eq.s32.totalorder %s32, 0
      %p222 = por %p220, %p221
      %s223 = sadd.s32 %s33, %s35
      %p224 = scmp.lt.s32.totalorder %s223, 0
      %s225 = scalar_select %p224, %s223, 0
      %s226 = sadd.s32 %s52, %s44
      %p227 = scmp.lt.s32.totalorder %s226, 0
      %s228 = scalar_select %p227, %s226, 0
      %s229 = ssub.s32 %s34, %s48
      %s230 = ssub.s32 %s225, %s228
      %s231 = sor.u32 %s229, %s230
      %p232 = scmp.eq.s32.totalorder %s231, 0
      %s234 = sadd.s32 %s233, 1
      %s235 = scalar_select %p232, %s233, %s234
      %p238 = pneg %p232
      %p239 = scmp.eq.s32.totalorder %s26, 1
      %p240 = por %p238, %p239
      %p241 = scmp.ne.s32.totalorder %s233, %s236
      %p242 = scmp.eq.s32.totalorder %s26, 0
      %p243 = por %p241, %p242
      %p244 = scmp.ne.s32.totalorder %s233, %s236
      %p245 = scmp.eq.s32.totalorder %s31, 1
      %p246 = por %p244, %p245
      %p247 = scmp.ne.s32.totalorder %s236, %s237
      %p248 = scmp.eq.s32.totalorder %s31, 0
      %p249 = por %p247, %p248
      %p250 = scmp.ne.s32.totalorder %s236, %s237
      %p251 = scmp.eq.s32.totalorder %s32, 1
      %p252 = por %p250, %p251
      %p254 = scmp.ne.s32.totalorder %s237, %s253
      %p255 = scmp.eq.s32.totalorder %s32, 0
      %p256 = por %p254, %p255
      %s257 = ssub.s32 %s33, %s52
      %p258 = scmp.eq.s32.totalorder %s257, 0
      %s260 = sadd.s32 %s259, 1
      %s261 = scalar_select %p258, %s259, %s260
      %p264 = pneg %p258
      %p265 = scmp.eq.s32.totalorder %s26, 1
      %p266 = por %p264, %p265
      %p267 = scmp.ne.s32.totalorder %s259, %s262
      %p268 = scmp.eq.s32.totalorder %s26, 0
      %p269 = por %p267, %p268
      %p270 = scmp.ne.s32.totalorder %s259, %s262
      %p271 = scmp.eq.s32.totalorder %s31, 1
      %p272 = por %p270, %p271
      %p273 = scmp.ne.s32.totalorder %s262, %s263
      %p274 = scmp.eq.s32.totalorder %s31, 0
      %p275 = por %p273, %p274
      %p276 = scmp.ne.s32.totalorder %s262, %s263
      %p277 = scmp.eq.s32.totalorder %s32, 1
      %p278 = por %p276, %p277
      %p280 = scmp.ne.s32.totalorder %s263, %s279
      %p281 = scmp.eq.s32.totalorder %s32, 0
      %p282 = por %p280, %p281
      %p283 = scmp.le.s32.totalorder 1, %s26
      %p284 = scmp.lt.s32.totalorder %s26, 3
      %p285 = pnand %p283, %p284
      %p286 = pneg %p285
      // Predicated region
      $region9: #{tpu_custom_call.1} parent=5 // pred_check
        _
      $region10: #{tpu_custom_call.1} parent=5 // pred_check_branch
        %288 = sbr.rel (%p285) target = $region12
      $region11: #{tpu_custom_call.1} parent=5 // pred_region
        %s289 = ssub.s32 %s26, 1
      $region12: #{tpu_custom_call.1} parent=5 // pred_fallthru
        _
      %p290 = scmp.lt.s32.totalorder %s26, 2
      // Predicated region
      $region13: #{tpu_custom_call.1} parent=5 // pred_check
        %p291 = pneg %p290
      $region14: #{tpu_custom_call.1} parent=5 // pred_check_branch
        %293 = sbr.rel (%p291) target = $region16
      $region15: #{tpu_custom_call.1} parent=5 // pred_region
        // Predicated region
        $region17: #{tpu_custom_call.1} parent=15 // pred_check
          %p294 = pneg %p73
        $region18: #{tpu_custom_call.1} parent=15 // pred_check_branch
          %296 = sbr.rel (%p294) target = $region20
        $region19: #{tpu_custom_call.1} parent=15 // pred_region
          %s297 = sand.u32 %s63, 1
          %s298 = scalar_lea.sflag [#allocation4], %s297
          %s299 = sand.u32 %s63, 1
          %s300 = smul.addr %s299, 48
          %s301 = scalar_lea.vmem [#allocation3], %s300
          %s302 = sadd.s32 %s33, %s35
          %p303 = scmp.lt.s32.totalorder %s302, 0
          %s304 = scalar_select %p303, %s302, 0
          %s305 = smul.u32 4, %s304
          %s307 = ssub.s32 768, 768
          %308 = vsyncadd %s298, %s307
          %s309 = smul.addr %s34, 12
          %s310 = sadd.s32 %s305, %s309
          %s311 = smul.addr %s310, 64
          %s312 = scalar_lea.hbm %s0, %s311
          %s313 = sshll.u32 %s301, 4
          %s314 = int_to_ptr.vmem [resolvable:$true] %s313
          %319 = dma.hbm_to_vmem [thread:$0]  %s312, 768, %s314, %s298, 64, 64, 4
        $region20: #{tpu_custom_call.1} parent=15 // pred_fallthru
          _
        // Predicated region
        $region21: #{tpu_custom_call.1} parent=15 // pred_check
          %p320 = pneg %p107
        $region22: #{tpu_custom_call.1} parent=15 // pred_check_branch
          %322 = sbr.rel (%p320) target = $region24
        $region23: #{tpu_custom_call.1} parent=15 // pred_region
          %s323 = sand.u32 %s26, 1
          %s324 = scalar_lea.sflag [#allocation7], %s323
          %s325 = sand.u32 %s97, 1
          %s326 = smul.addr %s325, 8
          %s327 = scalar_lea.vmem [#allocation6], %s326
          %s328 = sadd.s32 %s33, %s35
          %p329 = scmp.lt.s32.totalorder %s328, 0
          %s330 = scalar_select %p329, %s328, 0
          %s332 = ssub.s32 128, 128
          %333 = vsyncadd %s324, %s332
          %s334 = sadd.s32 %s330, %s34
          %s335 = smul.addr %s334, 128
          %s336 = scalar_lea.hbm %s1, %s335
          %s338 = sshll.u32 %s327, 4
          %s339 = int_to_ptr.vmem [resolvable:$true] %s338
          %341 = dma.hbm_to_vmem [thread:$0]  %s336, 128, %s339, %s324
        $region24: #{tpu_custom_call.1} parent=15 // pred_fallthru
          _
        // Predicated region
        $region25: #{tpu_custom_call.1} parent=15 // pred_check
          %p342 = pneg %p141
        $region26: #{tpu_custom_call.1} parent=15 // pred_check_branch
          %344 = sbr.rel (%p342) target = $region28
        $region27: #{tpu_custom_call.1} parent=15 // pred_region
          %s345 = sand.u32 %s26, 1
          %s346 = scalar_lea.sflag [#allocation7], %s345
          %s347 = sand.u32 %s131, 1
          %s348 = smul.addr %s347, 8
          %s349 = scalar_lea.vmem [#allocation8], %s348
          %s350 = sadd.s32 %s33, %s35
          %p351 = scmp.lt.s32.totalorder %s350, 0
          %s352 = scalar_select %p351, %s350, 0
          %s354 = ssub.s32 128, 128
          %355 = vsyncadd %s346, %s354
          %s356 = sadd.s32 %s352, %s34
          %s357 = smul.addr %s356, 128
          %s358 = scalar_lea.hbm %s2, %s357
          %s360 = sshll.u32 %s349, 4
          %s361 = int_to_ptr.vmem [resolvable:$true] %s360
          %363 = dma.hbm_to_vmem [thread:$0]  %s358, 128, %s361, %s346
        $region28: #{tpu_custom_call.1} parent=15 // pred_fallthru
          _
        // Predicated region
        $region29: #{tpu_custom_call.1} parent=15 // pred_check
          %p364 = pneg %p175
        $region30: #{tpu_custom_call.1} parent=15 // pred_check_branch
          %366 = sbr.rel (%p364) target = $region32
        $region31: #{tpu_custom_call.1} parent=15 // pred_region
          %s367 = sand.u32 %s26, 1
          %s368 = scalar_lea.sflag [#allocation10], %s367
          %s369 = sand.u32 %s165, 1
          %s370 = smul.addr %s369, 8
          %s371 = scalar_lea.vmem [#allocation9], %s370
          %s372 = sadd.s32 %s33, %s35
          %p373 = scmp.lt.s32.totalorder %s372, 0
          %s374 = scalar_select %p373, %s372, 0
          %s376 = ssub.s32 128, 128
          %377 = vsyncadd %s368, %s376
          %s378 = sadd.s32 %s374, %s34
          %s379 = smul.addr %s378, 128
          %s380 = scalar_lea.hbm %s3, %s379
          %s382 = sshll.u32 %s371, 4
          %s383 = int_to_ptr.vmem [resolvable:$true] %s382
          %385 = dma.hbm_to_vmem [thread:$0]  %s380, 128, %s383, %s368
        $region32: #{tpu_custom_call.1} parent=15 // pred_fallthru
          _
        // Predicated region
        $region33: #{tpu_custom_call.1} parent=15 // pred_check
          %p386 = pneg %p209
        $region34: #{tpu_custom_call.1} parent=15 // pred_check_branch
          %388 = sbr.rel (%p386) target = $region36
        $region35: #{tpu_custom_call.1} parent=15 // pred_region
          %s389 = sand.u32 %s26, 1
          %s390 = scalar_lea.sflag [#allocation10], %s389
          %s391 = sand.u32 %s199, 1
          %s392 = smul.addr %s391, 8
          %s393 = scalar_lea.vmem [#allocation11], %s392
          %s394 = sadd.s32 %s33, %s35
          %p395 = scmp.lt.s32.totalorder %s394, 0
          %s396 = scalar_select %p395, %s394, 0
          %s398 = ssub.s32 128, 128
          %399 = vsyncadd %s390, %s398
          %s400 = sadd.s32 %s396, %s34
          %s401 = smul.addr %s400, 128
          %s402 = scalar_lea.hbm %s4, %s401
          %s404 = sshll.u32 %s393, 4
          %s405 = int_to_ptr.vmem [resolvable:$true] %s404
          %407 = dma.hbm_to_vmem [thread:$0]  %s402, 128, %s405, %s390
        $region36: #{tpu_custom_call.1} parent=15 // pred_fallthru
          _
      $region16: #{tpu_custom_call.1} parent=5 // pred_fallthru
        _
      %p408 = scmp.le.s32.totalorder 1, %s26
      %p409 = scmp.lt.s32.totalorder %s26, 3
      %p410 = pnand %p408, %p409
      %p411 = pneg %p410
      // Predicated region
      $region37: #{tpu_custom_call.1} parent=5 // pred_check
        _
      $region38: #{tpu_custom_call.1} parent=5 // pred_check_branch
        %413 = sbr.rel (%p410) target = $region40
      $region39: #{tpu_custom_call.1} parent=5 // pred_region
        %s414 = ssub.s32 %s26, 1
        %s415 = sand.u32 %s66, 1
        %s416 = scalar_lea.sflag [#allocation4], %s415
        %s417 = sand.u32 %s66, 1
        %s418 = smul.addr %s417, 48
        %s419 = scalar_lea.vmem [#allocation3], %s418
        // Predicated region
        $region41: #{tpu_custom_call.1} parent=39 // pred_check
          %p420 = pneg %p79
        $region42: #{tpu_custom_call.1} parent=39 // pred_check_branch
          %422 = sbr.rel (%p420) target = $region44
        $region43: #{tpu_custom_call.1} parent=39 // pred_region
          %423 = dma.done %s416, 768
        $region44: #{tpu_custom_call.1} parent=39 // pred_fallthru
          _
        %s424 = sand.u32 %s31, 1
        %s425 = scalar_lea.sflag [#allocation7], %s424
        %s426 = sand.u32 %s100, 1
        %s427 = smul.addr %s426, 8
        %s428 = scalar_lea.vmem [#allocation6], %s427
        // Predicated region
        $region45: #{tpu_custom_call.1} parent=39 // pred_check
          %p429 = pneg %p113
        $region46: #{tpu_custom_call.1} parent=39 // pred_check_branch
          %431 = sbr.rel (%p429) target = $region48
        $region47: #{tpu_custom_call.1} parent=39 // pred_region
          %432 = dma.done %s425, 128
        $region48: #{tpu_custom_call.1} parent=39 // pred_fallthru
          _
        %s433 = sand.u32 %s31, 1
        %s434 = scalar_lea.sflag [#allocation7], %s433
        %s435 = sand.u32 %s134, 1
        %s436 = smul.addr %s435, 8
        %s437 = scalar_lea.vmem [#allocation8], %s436
        // Predicated region
        $region49: #{tpu_custom_call.1} parent=39 // pred_check
          %p438 = pneg %p147
        $region50: #{tpu_custom_call.1} parent=39 // pred_check_branch
          %440 = sbr.rel (%p438) target = $region52
        $region51: #{tpu_custom_call.1} parent=39 // pred_region
          %441 = dma.done %s434, 128
        $region52: #{tpu_custom_call.1} parent=39 // pred_fallthru
          _
        %s442 = sand.u32 %s31, 1
        %s443 = scalar_lea.sflag [#allocation10], %s442
        %s444 = sand.u32 %s168, 1
        %s445 = smul.addr %s444, 8
        %s446 = scalar_lea.vmem [#allocation9], %s445
        // Predicated region
        $region53: #{tpu_custom_call.1} parent=39 // pred_check
          %p447 = pneg %p181
        $region54: #{tpu_custom_call.1} parent=39 // pred_check_branch
          %449 = sbr.rel (%p447) target = $region56
        $region55: #{tpu_custom_call.1} parent=39 // pred_region
          %450 = dma.done %s443, 128
        $region56: #{tpu_custom_call.1} parent=39 // pred_fallthru
          _
        %s451 = sand.u32 %s31, 1
        %s452 = scalar_lea.sflag [#allocation10], %s451
        %s453 = sand.u32 %s202, 1
        %s454 = smul.addr %s453, 8
        %s455 = scalar_lea.vmem [#allocation11], %s454
        // Predicated region
        $region57: #{tpu_custom_call.1} parent=39 // pred_check
          %p456 = pneg %p215
        $region58: #{tpu_custom_call.1} parent=39 // pred_check_branch
          %458 = sbr.rel (%p456) target = $region60
        $region59: #{tpu_custom_call.1} parent=39 // pred_region
          %459 = dma.done %s452, 128
        $region60: #{tpu_custom_call.1} parent=39 // pred_fallthru
          _
        %s460 = sand.u32 %s66, 1
        %s461 = scalar_lea.sflag [#allocation4], %s460
        %s462 = sand.u32 %s66, 1
        %s463 = smul.addr %s462, 48
        %s464 = scalar_lea.vmem [#allocation3], %s463
        %p465 = pneg %p79
        %p466 = pneg %p76
        %s467 = sand.u32 %s31, 1
        %s468 = scalar_lea.sflag [#allocation7], %s467
        %s469 = sand.u32 %s100, 1
        %s470 = smul.addr %s469, 8
        %s471 = scalar_lea.vmem [#allocation6], %s470
        %p472 = pneg %p113
        %p473 = pneg %p110
        %s474 = sand.u32 %s31, 1
        %s475 = scalar_lea.sflag [#allocation7], %s474
        %s476 = sand.u32 %s134, 1
        %s477 = smul.addr %s476, 8
        %s478 = scalar_lea.vmem [#allocation8], %s477
        %p479 = pneg %p147
        %p480 = pneg %p144
        %s481 = sand.u32 %s31, 1
        %s482 = scalar_lea.sflag [#allocation10], %s481
        %s483 = sand.u32 %s168, 1
        %s484 = smul.addr %s483, 8
        %s485 = scalar_lea.vmem [#allocation9], %s484
        %p486 = pneg %p181
        %p487 = pneg %p178
        %s488 = sand.u32 %s31, 1
        %s489 = scalar_lea.sflag [#allocation10], %s488
        %s490 = sand.u32 %s202, 1
        %s491 = smul.addr %s490, 8
        %s492 = scalar_lea.vmem [#allocation11], %s491
        %p493 = pneg %p215
        %p494 = pneg %p212
        %p495 = pneg %p249
        %p496 = pneg %p246
        %s497 = sand.u32 %s236, 1
        %s498 = scalar_lea.sflag [#allocation5], %s497
        %s499 = sand.u32 %s236, 1
        %s500 = smul.addr %s499, 16
        %s501 = scalar_lea.vmem [#allocation12], %s500
        %p502 = pneg %p275
        %p503 = pneg %p272
        %s504 = sadd.s32 %s36, %s38
        %p505 = scmp.lt.s32.totalorder %s504, 0
        %s506 = scalar_select %p505, %s504, 0
        %s507 = smul.u32 4, %s506
        %s508 = sadd.s32 %s36, %s38
        %p509 = scmp.lt.s32.totalorder %s508, 0
        %s510 = scalar_select %p509, %s508, 0
        %s511 = sadd.s32 %s36, %s38
        %p512 = scmp.lt.s32.totalorder %s511, 0
        %s513 = scalar_select %p512, %s511, 0
        %s514 = sadd.s32 %s36, %s38
        %p515 = scmp.lt.s32.totalorder %s514, 0
        %s516 = scalar_select %p515, %s514, 0
        %s517 = sadd.s32 %s36, %s38
        %p518 = scmp.lt.s32.totalorder %s517, 0
        %s519 = scalar_select %p518, %s517, 0
        %s520 = sadd.s32 %s36, %s38
        %p521 = scmp.lt.s32.totalorder %s520, 0
        %s522 = scalar_select %p521, %s520, 0
        %s523 = smul.u32 4, %s522
        %p524 = scmp.eq.s32.totalorder %s37, 0
        %p525 = scmp.eq.s32.totalorder %s38, 0
        %p526 = pnand %p524, %p525
        %p527 = pneg %p526
        // Predicated region
        $region61: #{tpu_custom_call.1} parent=39 // pred_check
          _
        $region62: #{tpu_custom_call.1} parent=39 // pred_check_branch
          %529 = sbr.rel (%p526) target = $region64
        $region63: #{tpu_custom_call.1} parent=39 // pred_region
          %530 = vst [vmem:[#allocation2] sm:$0xff] 0.0
        $region64: #{tpu_custom_call.1} parent=39 // pred_fallthru
          _
        %v531 = vld [vmem:[%s419] sm:$0xf]
        %v532 = vld [vmem:[%s419 + $0x4] sm:$0xf]
        %v533 = vld [vmem:[%s419 + $0x8] sm:$0xf]
        %v534 = vld [vmem:[%s419 + $0xc] sm:$0xf]
        %v535 = vunpack.c.l.bf16 %v531
        %v536 = vunpack.c.l.bf16 %v532
        %v537 = vunpack.c.l.bf16 %v533
        %v538 = vunpack.c.l.bf16 %v534
        %s539 = scalar_lea.vmem %s419, 16 [#allocation3]
        %v540 = vld [vmem:[%s539] sm:$0xf]
        %v541 = vld [vmem:[%s539 + $0x4] sm:$0xf]
        %v542 = vld [vmem:[%s539 + $0x8] sm:$0xf]
        %v543 = vld [vmem:[%s539 + $0xc] sm:$0xf]
        %v544 = vunpack.c.l.bf16 %v540
        %v545 = vunpack.c.l.bf16 %v541
        %v546 = vunpack.c.l.bf16 %v542
        %v547 = vunpack.c.l.bf16 %v543
        %s548 = scalar_lea.vmem %s419, 32 [#allocation3]
        %v549 = vld [vmem:[%s548] sm:$0xf]
        %v550 = vld [vmem:[%s548 + $0x4] sm:$0xf]
        %v551 = vld [vmem:[%s548 + $0x8] sm:$0xf]
        %v552 = vld [vmem:[%s548 + $0xc] sm:$0xf]
        %v553 = vunpack.c.l.bf16 %v549
        %v554 = vunpack.c.l.bf16 %v550
        %v555 = vunpack.c.l.bf16 %v551
        %v556 = vunpack.c.l.bf16 %v552
        %v557 = vld [vmem:[%s428] sm:$0xff]
        %v558 = vunpack.c.0.s8 %v557
        %v559 = vunpack.c.1.s8 %v557
        %v560 = vunpack.c.2.s8 %v557
        %v561 = vunpack.c.3.s8 %v557
        %v562 = vcvt.s32.f32 %v558
        %v563 = vcvt.s32.f32 %v559
        %v564 = vcvt.s32.f32 %v560
        %v565 = vcvt.s32.f32 %v561
        %v566 = vld [vmem:[%s437] sm:$0xff]
        %v567 = vunpack.c.0.s8 %v566
        %v568 = vunpack.c.1.s8 %v566
        %v569 = vunpack.c.2.s8 %v566
        %v570 = vunpack.c.3.s8 %v566
        %v571 = vcvt.s32.f32 %v567
        %v572 = vcvt.s32.f32 %v568
        %v573 = vcvt.s32.f32 %v569
        %v574 = vcvt.s32.f32 %v570
        %v575 = vld [vmem:[%s446] sm:$0xff]
        %v576 = vunpack.c.0.s8 %v575
        %v577 = vunpack.c.1.s8 %v575
        %v578 = vunpack.c.2.s8 %v575
        %v579 = vunpack.c.3.s8 %v575
        %v580 = vcvt.s32.f32 %v576
        %v581 = vcvt.s32.f32 %v577
        %v582 = vcvt.s32.f32 %v578
        %v583 = vcvt.s32.f32 %v579
        %v584 = vld [vmem:[%s455] sm:$0xff]
        %v585 = vunpack.c.0.s8 %v584
        %v586 = vunpack.c.1.s8 %v584
        %v587 = vunpack.c.2.s8 %v584
        %v588 = vunpack.c.3.s8 %v584
        %v589 = vcvt.s32.f32 %v585
        %v590 = vcvt.s32.f32 %v586
        %v591 = vcvt.s32.f32 %v587
        %v592 = vcvt.s32.f32 %v588
        %v593 = vmul.f32 %v562, %v571
        %v594 = vmul.f32 %v563, %v572
        %v595 = vmul.f32 %v564, %v573
        %v596 = vmul.f32 %v565, %v574
        %v597 = vsub.f32 %v571, %v593
        %v598 = vsub.f32 %v572, %v594
        %v599 = vsub.f32 %v573, %v595
        %v600 = vsub.f32 %v574, %v596
        %v601 = vmax.f32 %v535, 0.0
        %v602 = vmax.f32 %v536, 0.0
        %v603 = vmax.f32 %v537, 0.0
        %v604 = vmax.f32 %v538, 0.0
        %v605 = vmul.f32 %v535, %v562
        %v606 = vmul.f32 %v536, %v563
        %v607 = vmul.f32 %v537, %v564
        %v608 = vmul.f32 %v538, %v565
        %v609 = vsub.f32 %v601, %v605
        %v610 = vsub.f32 %v602, %v606
        %v611 = vsub.f32 %v603, %v607
        %v612 = vsub.f32 %v604, %v608
        %v613 = vand.u32 2147483647, %v535
        %v614 = vand.u32 2147483647, %v536
        %v615 = vand.u32 2147483647, %v537
        %v616 = vand.u32 2147483647, %v538
        %v617 = vsub.f32 0.0, %v613
        %v618 = vsub.f32 0.0, %v614
        %v619 = vsub.f32 0.0, %v615
        %v620 = vsub.f32 0.0, %v616
        %v621 = vmul.f32 %v617, 1.442695
        %v622 = vpow.pop %v621
        %v623 = vmul.f32 %v618, 1.442695
        %v624 = vpow.pop %v623
        %v625 = vmul.f32 %v619, 1.442695
        %v626 = vpow.pop %v625
        %v627 = vmul.f32 %v620, 1.442695
        %v628 = vpow.pop %v627
        %v629 = vadd.f32 %v622, 1.0
        %v630 = vadd.f32 %v624, 1.0
        %v631 = vadd.f32 %v626, 1.0
        %v632 = vadd.f32 %v628, 1.0
        %v633 = vlog2.pop %v629
        %v634 = vmul.f32 %v633, 0.6931472
        %v635 = vlog2.pop %v630
        %v636 = vmul.f32 %v635, 0.6931472
        %v637 = vlog2.pop %v631
        %v638 = vmul.f32 %v637, 0.6931472
        %v639 = vlog2.pop %v632
        %v640 = vmul.f32 %v639, 0.6931472
        %v641 = vadd.f32 %v609, %v634
        %v642 = vadd.f32 %v610, %v636
        %v643 = vadd.f32 %v611, %v638
        %v644 = vadd.f32 %v612, %v640
        %v645 = vmin.f32 %v641, 100.0
        %v646 = vmin.f32 %v642, 100.0
        %v647 = vmin.f32 %v643, 100.0
        %v648 = vmin.f32 %v644, 100.0
        %v649 = vmul.f32 %v645, %v597
        %v650 = vmul.f32 %v646, %v598
        %v651 = vmul.f32 %v647, %v599
        %v652 = vmul.f32 %v648, %v600
        %v653 = vpack.c.bf16 %v650, %v649
        %v654 = vpack.c.bf16 %v652, %v651
        %v657 = vunpack.c.l.b16 %v653
        %v658 = vunpack.c.h.b16 %v653
        %v659 = vunpack.c.l.b16 %v654
        %v660 = vunpack.c.h.b16 %v654
        %v661 = vpack.c.b16 %v657, %v657
        %v662 = vpack.c.b16 %v658, %v658
        %v663 = vpack.c.b16 %v659, %v659
        %v664 = vpack.c.b16 %v660, %v660
        %vm669 = vcmask 257024
        %670 = vst.msk [vmem:[%s501] sm:$0xf] %vm669, %v661
        %671 = vst.msk [vmem:[%s501 + $0x4] sm:$0xf] %vm669, %v662
        %672 = vst.msk [vmem:[%s501 + $0x8] sm:$0xf] %vm669, %v663
        %673 = vst.msk [vmem:[%s501 + $0xc] sm:$0xf] %vm669, %v664
        %v674 = vmax.f32 %v553, 0.0
        %v675 = vmax.f32 %v554, 0.0
        %v676 = vmax.f32 %v555, 0.0
        %v677 = vmax.f32 %v556, 0.0
        %v678 = vmul.f32 %v553, %v589
        %v679 = vmul.f32 %v554, %v590
        %v680 = vmul.f32 %v555, %v591
        %v681 = vmul.f32 %v556, %v592
        %v682 = vsub.f32 %v674, %v678
        %v683 = vsub.f32 %v675, %v679
        %v684 = vsub.f32 %v676, %v680
        %v685 = vsub.f32 %v677, %v681
        %v686 = vand.u32 2147483647, %v553
        %v687 = vand.u32 2147483647, %v554
        %v688 = vand.u32 2147483647, %v555
        %v689 = vand.u32 2147483647, %v556
        %v690 = vsub.f32 0.0, %v686
        %v691 = vsub.f32 0.0, %v687
        %v692 = vsub.f32 0.0, %v688
        %v693 = vsub.f32 0.0, %v689
        %v694 = vmul.f32 %v690, 1.442695
        %v695 = vpow.pop %v694
        %v696 = vmul.f32 %v691, 1.442695
        %v697 = vpow.pop %v696
        %v698 = vmul.f32 %v692, 1.442695
        %v699 = vpow.pop %v698
        %v700 = vmul.f32 %v693, 1.442695
        %v701 = vpow.pop %v700
        %v702 = vadd.f32 %v695, 1.0
        %v703 = vadd.f32 %v697, 1.0
        %v704 = vadd.f32 %v699, 1.0
        %v705 = vadd.f32 %v701, 1.0
        %v706 = vlog2.pop %v702
        %v707 = vmul.f32 %v706, 0.6931472
        %v708 = vlog2.pop %v703
        %v709 = vmul.f32 %v708, 0.6931472
        %v710 = vlog2.pop %v704
        %v711 = vmul.f32 %v710, 0.6931472
        %v712 = vlog2.pop %v705
        %v713 = vmul.f32 %v712, 0.6931472
        %v714 = vadd.f32 %v682, %v707
        %v715 = vadd.f32 %v683, %v709
        %v716 = vadd.f32 %v684, %v711
        %v717 = vadd.f32 %v685, %v713
        %v718 = vmin.f32 %v714, 100.0
        %v719 = vmin.f32 %v715, 100.0
        %v720 = vmin.f32 %v716, 100.0
        %v721 = vmin.f32 %v717, 100.0
        %v722 = vxor.u32 %v544, 2147483648
        %v723 = vxor.u32 %v545, 2147483648
        %v724 = vxor.u32 %v546, 2147483648
        %v725 = vxor.u32 %v547, 2147483648
        %v726 = vmul.f32 %v722, 1.442695
        %v727 = vpow.pop %v726
        %v728 = vmul.f32 %v723, 1.442695
        %v729 = vpow.pop %v728
        %v730 = vmul.f32 %v724, 1.442695
        %v731 = vpow.pop %v730
        %v732 = vmul.f32 %v725, 1.442695
        %v733 = vpow.pop %v732
        %v734 = vadd.f32 %v727, 1.0
        %v735 = vadd.f32 %v729, 1.0
        %v736 = vadd.f32 %v731, 1.0
        %v737 = vadd.f32 %v733, 1.0
        %v738 = vrcp.pop %v734
        %v739 = vmul.f32 1.0, %v738
        %v740 = vrcp.pop %v735
        %v741 = vmul.f32 1.0, %v740
        %v742 = vrcp.pop %v736
        %v743 = vmul.f32 1.0, %v742
        %v744 = vrcp.pop %v737
        %v745 = vmul.f32 1.0, %v744
        %v746 = vsub.f32 %v739, %v580
        %v747 = vsub.f32 %v741, %v581
        %v748 = vsub.f32 %v743, %v582
        %v749 = vsub.f32 %v745, %v583
        %v750 = vand.u32 2147483647, %v746
        %v751 = vand.u32 2147483647, %v747
        %v752 = vand.u32 2147483647, %v748
        %v753 = vand.u32 2147483647, %v749
        %vm754 = vcmp.lt.f32.partialorder %v750, 1.0
        %vm755 = vcmp.lt.f32.partialorder %v751, 1.0
        %vm756 = vcmp.lt.f32.partialorder %v752, 1.0
        %vm757 = vcmp.lt.f32.partialorder %v753, 1.0
        %v758 = vmul.f32 %v746, 0.5
        %v759 = vmul.f32 %v747, 0.5
        %v760 = vmul.f32 %v748, 0.5
        %v761 = vmul.f32 %v749, 0.5
        %v762 = vmul.f32 %v758, %v746
        %v763 = vmul.f32 %v759, %v747
        %v764 = vmul.f32 %v760, %v748
        %v765 = vmul.f32 %v761, %v749
        %v766 = vsub.f32 %v750, 0.5
        %v767 = vsub.f32 %v751, 0.5
        %v768 = vsub.f32 %v752, 0.5
        %v769 = vsub.f32 %v753, 0.5
        %v770 = vsel %vm754, %v762, %v766
        %v771 = vsel %vm755, %v763, %v767
        %v772 = vsel %vm756, %v764, %v768
        %v773 = vsel %vm757, %v765, %v769
        %v774 = vmul.f32 %v645, %v593
        %v775 = vmul.f32 %v646, %v594
        %v776 = vmul.f32 %v647, %v595
        %v777 = vmul.f32 %v648, %v596
        %vm778 = vcmask 261120
        %v779 = vsel %vm778, %v774, 0.0
        %780 = vadd.xlane.f32.xlu0 %v779
        %v781 = vpop.xlane.xlu0 %780
        %v782 = vsel %vm778, %v775, 0.0
        %783 = vadd.xlane.f32.xlu0 %v782
        %v784 = vpop.xlane.xlu0 %783
        %v785 = vsel %vm778, %v776, 0.0
        %786 = vadd.xlane.f32.xlu0 %v785
        %v787 = vpop.xlane.xlu0 %786
        %v788 = vsel %vm778, %v777, 0.0
        %789 = vadd.xlane.f32.xlu0 %v788
        %v790 = vpop.xlane.xlu0 %789
        %vm791 = vcmask 7168
        %v792 = vsel %vm791, %v781, 0.0
        %v793 = vsel %vm791, %v784, 0.0
        %v794 = vadd.f32 %v792, %v793
        %v795 = vsel %vm791, %v787, 0.0
        %v796 = vadd.f32 %v794, %v795
        %v797 = vsel %vm791, %v790, 0.0
        %v798 = vadd.f32 %v796, %v797
        %799 = vadd.xlane.f32.xlu0 %v798
        %v800 = vpop.xlane.xlu0 %799
        %v801 = vrot.slane %v800, 4
        %v802 = vadd.f32 %v800, %v801
        %v803 = vrot.slane %v802, 2
        %v804 = vadd.f32 %v802, %v803
        %v805 = vrot.slane %v804, 1
        %v806 = vadd.f32 %v804, %v805
        %s807 = vtos %v806
        %v808 = vsel %vm778, %v593, 0.0
        %809 = vadd.xlane.f32.xlu0 %v808
        %v810 = vpop.xlane.xlu0 %809
        %v811 = vsel %vm778, %v594, 0.0
        %812 = vadd.xlane.f32.xlu0 %v811
        %v813 = vpop.xlane.xlu0 %812
        %v814 = vsel %vm778, %v595, 0.0
        %815 = vadd.xlane.f32.xlu0 %v814
        %v816 = vpop.xlane.xlu0 %815
        %v817 = vsel %vm778, %v596, 0.0
        %818 = vadd.xlane.f32.xlu0 %v817
        %v819 = vpop.xlane.xlu0 %818
        %v820 = vsel %vm791, %v810, 0.0
        %v821 = vsel %vm791, %v813, 0.0
        %v822 = vadd.f32 %v820, %v821
        %v823 = vsel %vm791, %v816, 0.0
        %v824 = vadd.f32 %v822, %v823
        %v825 = vsel %vm791, %v819, 0.0
        %v826 = vadd.f32 %v824, %v825
        %827 = vadd.xlane.f32.xlu0 %v826
        %v828 = vpop.xlane.xlu0 %827
        %v829 = vrot.slane %v828, 4
        %v830 = vadd.f32 %v828, %v829
        %v831 = vrot.slane %v830, 2
        %v832 = vadd.f32 %v830, %v831
        %v833 = vrot.slane %v832, 1
        %v834 = vadd.f32 %v832, %v833
        %s835 = vtos %v834
        %v836 = vsel %vm778, %v571, 0.0
        %837 = vadd.xlane.f32.xlu0 %v836
        %v838 = vpop.xlane.xlu0 %837
        %v839 = vsel %vm778, %v572, 0.0
        %840 = vadd.xlane.f32.xlu0 %v839
        %v841 = vpop.xlane.xlu0 %840
        %v842 = vsel %vm778, %v573, 0.0
        %843 = vadd.xlane.f32.xlu0 %v842
        %v844 = vpop.xlane.xlu0 %843
        %v845 = vsel %vm778, %v574, 0.0
        %846 = vadd.xlane.f32.xlu0 %v845
        %v847 = vpop.xlane.xlu0 %846
        %v848 = vsel %vm791, %v838, 0.0
        %v849 = vsel %vm791, %v841, 0.0
        %v850 = vadd.f32 %v848, %v849
        %v851 = vsel %vm791, %v844, 0.0
        %v852 = vadd.f32 %v850, %v851
        %v853 = vsel %vm791, %v847, 0.0
        %v854 = vadd.f32 %v852, %v853
        %855 = vadd.xlane.f32.xlu0 %v854
        %v856 = vpop.xlane.xlu0 %855
        %v857 = vrot.slane %v856, 4
        %v858 = vadd.f32 %v856, %v857
        %v859 = vrot.slane %v858, 2
        %v860 = vadd.f32 %v858, %v859
        %v861 = vrot.slane %v860, 1
        %v862 = vadd.f32 %v860, %v861
        %s863 = vtos %v862
        %v864 = vmul.f32 %v718, %v593
        %v865 = vmul.f32 %v719, %v594
        %v866 = vmul.f32 %v720, %v595
        %v867 = vmul.f32 %v721, %v596
        %v868 = vsel %vm778, %v864, 0.0
        %869 = vadd.xlane.f32.xlu0 %v868
        %v870 = vpop.xlane.xlu0 %869
        %v871 = vsel %vm778, %v865, 0.0
        %872 = vadd.xlane.f32.xlu0 %v871
        %v873 = vpop.xlane.xlu0 %872
        %v874 = vsel %vm778, %v866, 0.0
        %875 = vadd.xlane.f32.xlu0 %v874
        %v876 = vpop.xlane.xlu0 %875
        %v877 = vsel %vm778, %v867, 0.0
        %878 = vadd.xlane.f32.xlu0 %v877
        %v879 = vpop.xlane.xlu0 %878
        %v880 = vsel %vm791, %v870, 0.0
        %v881 = vsel %vm791, %v873, 0.0
        %v882 = vadd.f32 %v880, %v881
        %v883 = vsel %vm791, %v876, 0.0
        %v884 = vadd.f32 %v882, %v883
        %v885 = vsel %vm791, %v879, 0.0
        %v886 = vadd.f32 %v884, %v885
        %887 = vadd.xlane.f32.xlu0 %v886
        %v888 = vpop.xlane.xlu0 %887
        %v889 = vrot.slane %v888, 4
        %v890 = vadd.f32 %v888, %v889
        %v891 = vrot.slane %v890, 2
        %v892 = vadd.f32 %v890, %v891
        %v893 = vrot.slane %v892, 1
        %v894 = vadd.f32 %v892, %v893
        %s895 = vtos %v894
        %v896 = vmul.f32 %v770, %v589
        %v897 = vmul.f32 %v771, %v590
        %v898 = vmul.f32 %v772, %v591
        %v899 = vmul.f32 %v773, %v592
        %v900 = vsel %vm778, %v896, 0.0
        %901 = vadd.xlane.f32.xlu0 %v900
        %v902 = vpop.xlane.xlu0 %901
        %v903 = vsel %vm778, %v897, 0.0
        %904 = vadd.xlane.f32.xlu0 %v903
        %v905 = vpop.xlane.xlu0 %904
        %v906 = vsel %vm778, %v898, 0.0
        %907 = vadd.xlane.f32.xlu0 %v906
        %v908 = vpop.xlane.xlu0 %907
        %v909 = vsel %vm778, %v899, 0.0
        %910 = vadd.xlane.f32.xlu0 %v909
        %v911 = vpop.xlane.xlu0 %910
        %v912 = vsel %vm791, %v902, 0.0
        %v913 = vsel %vm791, %v905, 0.0
        %v914 = vadd.f32 %v912, %v913
        %v915 = vsel %vm791, %v908, 0.0
        %v916 = vadd.f32 %v914, %v915
        %v917 = vsel %vm791, %v911, 0.0
        %v918 = vadd.f32 %v916, %v917
        %919 = vadd.xlane.f32.xlu0 %v918
        %v920 = vpop.xlane.xlu0 %919
        %v921 = vrot.slane %v920, 4
        %v922 = vadd.f32 %v920, %v921
        %v923 = vrot.slane %v922, 2
        %v924 = vadd.f32 %v922, %v923
        %v925 = vrot.slane %v924, 1
        %v926 = vadd.f32 %v924, %v925
        %s927 = vtos %v926
        %v928 = vsel %vm778, %v589, 0.0
        %929 = vadd.xlane.f32.xlu0 %v928
        %v930 = vpop.xlane.xlu0 %929
        %v931 = vsel %vm778, %v590, 0.0
        %932 = vadd.xlane.f32.xlu0 %v931
        %v933 = vpop.xlane.xlu0 %932
        %v934 = vsel %vm778, %v591, 0.0
        %935 = vadd.xlane.f32.xlu0 %v934
        %v936 = vpop.xlane.xlu0 %935
        %v937 = vsel %vm778, %v592, 0.0
        %938 = vadd.xlane.f32.xlu0 %v937
        %v939 = vpop.xlane.xlu0 %938
        %v940 = vsel %vm791, %v930, 0.0
        %v941 = vsel %vm791, %v933, 0.0
        %v942 = vadd.f32 %v940, %v941
        %v943 = vsel %vm791, %v936, 0.0
        %v944 = vadd.f32 %v942, %v943
        %v945 = vsel %vm791, %v939, 0.0
        %v946 = vadd.f32 %v944, %v945
        %947 = vadd.xlane.f32.xlu0 %v946
        %v948 = vpop.xlane.xlu0 %947
        %v949 = vrot.slane %v948, 4
        %v950 = vadd.f32 %v948, %v949
        %v951 = vrot.slane %v950, 2
        %v952 = vadd.f32 %v950, %v951
        %v953 = vrot.slane %v952, 1
        %v954 = vadd.f32 %v952, %v953
        %s955 = vtos %v954
        %v956 = vlaneseq
        %v957 = vshrl.u32 %v956, 7
        %v958 = vld [vmem:[#allocation2] sm:$0xff]
        %vm959 = vcmp.eq.s32.totalorder %v957, 0
        %v960 = vstv %s807
        %v961 = vsel %vm959, %v960, 0.0
        %vm962 = vcmp.eq.s32.totalorder %v957, 1
        %v963 = vstv %s835
        %v964 = vsel %vm962, %v963, 0.0
        %v965 = vadd.f32 %v961, %v964
        %vm966 = vcmp.eq.s32.totalorder %v957, 2
        %v967 = vstv %s863
        %v968 = vsel %vm966, %v967, 0.0
        %v969 = vadd.f32 %v965, %v968
        %vm970 = vcmp.eq.s32.totalorder %v957, 3
        %v971 = vstv %s895
        %v972 = vsel %vm970, %v971, 0.0
        %v973 = vadd.f32 %v969, %v972
        %vm974 = vcmp.eq.s32.totalorder %v957, 4
        %v975 = vstv %s927
        %v976 = vsel %vm974, %v975, 0.0
        %v977 = vadd.f32 %v973, %v976
        %vm978 = vcmp.eq.s32.totalorder %v957, 5
        %v979 = vstv %s955
        %v980 = vsel %vm978, %v979, 0.0
        %v981 = vadd.f32 %v977, %v980
        %v982 = vadd.f32 %v958, %v981
        %983 = vst [vmem:[#allocation2] sm:$0xff] %v982
        %p984 = scmp.eq.s32.totalorder %s37, 1
        %p985 = pnand %p984, %p525
        %p986 = pneg %p985
        // Predicated region
        $region65: #{tpu_custom_call.1} parent=39 // pred_check
          _
        $region66: #{tpu_custom_call.1} parent=39 // pred_check_branch
          %988 = sbr.rel (%p985) target = $region68
        $region67: #{tpu_custom_call.1} parent=39 // pred_region
          %v989 = vld [vmem:[#allocation2] sm:$0xff]
          %990 = vst [vmem:[#allocation13] sm:$0xff] %v989
        $region68: #{tpu_custom_call.1} parent=39 // pred_fallthru
          _
        %s991 = sand.u32 %s236, 1
        %s992 = scalar_lea.sflag [#allocation5], %s991
        %s993 = sand.u32 %s236, 1
        %s994 = smul.addr %s993, 16
        %s995 = scalar_lea.vmem [#allocation12], %s994
        // Predicated region
        $region69: #{tpu_custom_call.1} parent=39 // pred_check
          %p996 = pneg %p246
        $region70: #{tpu_custom_call.1} parent=39 // pred_check_branch
          %998 = sbr.rel (%p996) target = $region72
        $region71: #{tpu_custom_call.1} parent=39 // pred_region
          %s999 = sadd.s32 %s36, %s38
          %p1000 = scmp.lt.s32.totalorder %s999, 0
          %s1001 = scalar_select %p1000, %s999, 0
          %s1002 = smul.u32 4, %s1001
          %s1004 = ssub.s32 256, 256
          %1005 = vsyncadd %s992, %s1004
          %s1006 = smul.addr %s37, 4
          %s1007 = sadd.s32 %s1002, %s1006
          %s1008 = smul.addr %s1007, 64
          %s1009 = scalar_lea.hbm %s5, %s1008
          %s1010 = sshll.u32 %s995, 4
          %s1011 = int_to_ptr.vmem [resolvable:$true] %s1010
          %1016 = dma.vmem_to_hbm [thread:$0]  %s1011, 256, %s1009, %s992, 64, 64, 4
        $region72: #{tpu_custom_call.1} parent=39 // pred_fallthru
          _
        // Predicated region
        $region73: #{tpu_custom_call.1} parent=39 // pred_check
          %p1017 = pneg %p272
        $region74: #{tpu_custom_call.1} parent=39 // pred_check_branch
          %1019 = sbr.rel (%p1017) target = $region76
        $region75: #{tpu_custom_call.1} parent=39 // pred_region
          %s1021 = ssub.s32 128, 128
          %1022 = vsyncadd [#allocation14], %s1021
          %s1023 = smul.addr %s36, 128
          %s1024 = scalar_lea.hbm %s6, %s1023
          %s1026 = sshll.u32 [#allocation13], 4
          %s1027 = int_to_ptr.vmem [resolvable:$true] %s1026
          %1029 = dma.vmem_to_hbm [thread:$0]  %s1027, 128, %s1024, [#allocation14]
        $region76: #{tpu_custom_call.1} parent=39 // pred_fallthru
          _
        // Predicated region
        $region77: #{tpu_custom_call.1} parent=39 // pred_check
          %p1030 = pneg %p272
        $region78: #{tpu_custom_call.1} parent=39 // pred_check_branch
          %1032 = sbr.rel (%p1030) target = $region80
        $region79: #{tpu_custom_call.1} parent=39 // pred_region
          %1033 = dma.done [#allocation14], 128
        $region80: #{tpu_custom_call.1} parent=39 // pred_fallthru
          _
      $region40: #{tpu_custom_call.1} parent=5 // pred_fallthru
        _
      %p1034 = scmp.le.s32.totalorder 2, %s26
      // Predicated region
      $region81: #{tpu_custom_call.1} parent=5 // pred_check
        %p1035 = pneg %p1034
      $region82: #{tpu_custom_call.1} parent=5 // pred_check_branch
        %1037 = sbr.rel (%p1035) target = $region84
      $region83: #{tpu_custom_call.1} parent=5 // pred_region
        %s1038 = ssub.s32 %s26, 2
        // Predicated region
        $region85: #{tpu_custom_call.1} parent=83 // pred_check
          %p1039 = pneg %p252
        $region86: #{tpu_custom_call.1} parent=83 // pred_check_branch
          %1041 = sbr.rel (%p1039) target = $region88
        $region87: #{tpu_custom_call.1} parent=83 // pred_region
          %s1042 = sand.u32 %s237, 1
          %s1043 = scalar_lea.sflag [#allocation5], %s1042
          %s1044 = sand.u32 %s237, 1
          %s1045 = smul.addr %s1044, 16
          %s1046 = scalar_lea.vmem [#allocation12], %s1045
          %1047 = dma.done %s1043, 256
        $region88: #{tpu_custom_call.1} parent=83 // pred_fallthru
          _
      $region84: #{tpu_custom_call.1} parent=5 // pred_fallthru
        _
    $region6: #{tpu_custom_call.1} parent=1 // loop_footer
      %s30 = sadd.s32 1, %s26
    $region7: #{tpu_custom_call.1} parent=1 // loop_footer_branch
      %25 = sbr.rel target = $region3
    $region8: #{tpu_custom_call.1} parent=1 // loop_exit
      _
    %1048 = vsyncpa [#allocation4], 1
    %s1049 = scalar_lea.sflag [#allocation4], 1
    %1050 = vsyncpa %s1049, 1
    %1051 = vsyncpa [#allocation7], 1
    %s1052 = scalar_lea.sflag [#allocation7], 1
    %1053 = vsyncpa %s1052, 1
    %1054 = vsyncpa [#allocation10], 1
    %s1055 = scalar_lea.sflag [#allocation10], 1
    %1056 = vsyncpa %s1055, 1
    %1057 = vsyncpa [#allocation5], 1
    %s1058 = scalar_lea.sflag [#allocation5], 1
    %1059 = vsyncpa %s1058, 1
    %1060 = vsyncpa [#allocation14], 1

</llo_original>
